<compile_context>
chip_gen: v5e
topology: v5e:2x2
jax: 0.10.0
libtpu: 0.0.40
codegen_flags: <defaults>
</compile_context>

<pallas_src>
import functools
import math

import jax
import jax.numpy as jnp
from jax.experimental import pallas as pl
from jax.experimental.pallas import tpu as pltpu

LN_EPS = 1e-12

CFG = dict(
    vocab_size=100,
    hidden_size=32,
    num_hidden_layers=2,
    num_attention_heads=4,
    intermediate_size=64,
    max_position_embeddings=32,
    type_vocab_size=2,
)


# ---------------------------------------------------------------------------
# In-kernel helpers (f32 elementwise math)
# ---------------------------------------------------------------------------
def _ln(x, g, b):
    mu = jnp.mean(x, axis=-1, keepdims=True)
    var = jnp.mean(jnp.square(x - mu), axis=-1, keepdims=True)
    return (x - mu) * jax.lax.rsqrt(var + LN_EPS) * g + b


def _gelu(y):
    # TODO(synk): HF BERT uses erf-gelu; tanh approximation used here
    #             (erf has no guaranteed Mosaic lowering).
    c = math.sqrt(2.0 / math.pi)
    return 0.5 * y * (1.0 + jnp.tanh(c * (y + 0.044715 * y * y * y)))


# ---------------------------------------------------------------------------
# Pallas kernels
# ---------------------------------------------------------------------------
def _ln_kernel(x_ref, g_ref, b_ref, o_ref):
    """LayerNorm over last axis, no residual input."""
    o_ref[...] = _ln(x_ref[...], g_ref[...], b_ref[...])


def layernorm(x, gamma2d, beta2d):
    """x:[M,H] f32 -> LayerNorm(x):[M,H] f32."""
    M, H = x.shape
    return pl.pallas_call(
        _ln_kernel,
        out_shape=jax.ShapeDtypeStruct((M, H), jnp.float32),
        in_specs=[
            pl.BlockSpec((M, H), lambda: (0, 0)),
            pl.BlockSpec((1, H), lambda: (0, 0)),
            pl.BlockSpec((1, H), lambda: (0, 0)),
        ],
        out_specs=pl.BlockSpec((M, H), lambda: (0, 0)),
    )(x, gamma2d, beta2d)


def _layer_kernel(h_ref, m_ref, qkvw_ref, qkvb_ref, aow_ref, vech_ref,
                  interb_ref, interw_ref, outw_ref, o_ref, *, heads, dh):
    """One whole BertLayer for one batch element (grid step)."""
    h = h_ref[...]                                  # [S, H] f32
    S, H = h.shape
    h_bf = h.astype(jnp.bfloat16)
    mask = m_ref[0]                                 # [1, S] additive (-10000 / 0)

    vech = vech_ref[...]                            # [6, H] f32
    ao_b, ln1_g, ln1_b = vech[0:1, :], vech[1:2, :], vech[2:3, :]
    out_b, ln2_g, ln2_b = vech[3:4, :], vech[4:5, :], vech[5:6, :]

    # --- self-attention -----------------------------------------------------
    # Single fused Q/K/V projection: one [S,H] x [H,3H] bf16 MXU matmul.
    # The 1/sqrt(dh) softmax scale is pre-folded into the Q columns/bias.
    qkv = jnp.dot(h_bf, qkvw_ref[...],
                  preferred_element_type=jnp.float32) + qkvb_ref[...]   # [S, 3H]

    ctxs = []
    for hd in range(heads):
        q = qkv[:, hd * dh:(hd + 1) * dh]                               # [S, dh]
        k = qkv[:, H + hd * dh:H + (hd + 1) * dh]                       # [S, dh]
        v = qkv[:, 2 * H + hd * dh:2 * H + (hd + 1) * dh]               # [S, dh]

        s = jnp.dot(q, k.T, preferred_element_type=jnp.float32) + mask  # [S, S]
        s = s - jnp.max(s, axis=-1, keepdims=True)
        p = jnp.exp(s)
        p = p * pl.reciprocal(jnp.sum(p, axis=-1, keepdims=True), approx=True)
        ctxs.append(jnp.dot(p, v, preferred_element_type=jnp.float32))  # [S, dh]

    ctx = jnp.concatenate(ctxs, axis=-1)                                # [S, H]

    # Single attention-output projection (no per-head accumulation).
    attn = jnp.dot(ctx.astype(jnp.bfloat16), aow_ref[...],
                   preferred_element_type=jnp.float32) + ao_b

    # BertSelfOutput: LayerNorm(attn_out + h)
    h1 = _ln(attn + h, ln1_g, ln1_b)

    # BertIntermediate + BertOutput (intermediate stays in VMEM/registers)
    inter = jnp.dot(h1.astype(jnp.bfloat16), interw_ref[...],
                    preferred_element_type=jnp.float32) + interb_ref[...]
    inter = _gelu(inter)
    ffn = jnp.dot(inter.astype(jnp.bfloat16), outw_ref[...],
                  preferred_element_type=jnp.float32) + out_b

    o_ref[...] = _ln(ffn + h1, ln2_g, ln2_b)


def bert_layer(h2d, mask_f, lp, *, B, S, heads):
    """h2d:[B*S,H] f32, mask_f:[B,1,S] f32 additive -> [B*S,H] f32."""
    H = h2d.shape[1]
    dh = H // heads
    I = lp["inter_w"].shape[1]
    kern = functools.partial(_layer_kernel, heads=heads, dh=dh)
    return pl.pallas_call(
        kern,
        grid=(B,),
        out_shape=jax.ShapeDtypeStruct((B * S, H), jnp.float32),
        in_specs=[
            pl.BlockSpec((S, H), lambda b: (b, 0)),            # hidden rows for batch b
            pl.BlockSpec((1, 1, S), lambda b: (b, 0, 0)),      # mask row for batch b
            pl.BlockSpec((H, 3 * H), lambda b: (0, 0)),        # fused Q/K/V weight (bf16)
            pl.BlockSpec((1, 3 * H), lambda b: (0, 0)),        # fused Q/K/V bias
            pl.BlockSpec((H, H), lambda b: (0, 0)),            # attn-output weight (bf16)
            pl.BlockSpec((6, H), lambda b: (0, 0)),            # [ao_b, ln1_g, ln1_b, out_b, ln2_g, ln2_b]
            pl.BlockSpec((1, I), lambda b: (0, 0)),            # intermediate bias
            pl.BlockSpec((H, I), lambda b: (0, 0)),            # intermediate weight (bf16)
            pl.BlockSpec((I, H), lambda b: (0, 0)),            # output weight (bf16)
        ],
        out_specs=pl.BlockSpec((S, H), lambda b: (b, 0)),
        compiler_params=pltpu.CompilerParams(dimension_semantics=("parallel",)),
    )(h2d, mask_f, lp["qkv_w"], lp["qkv_b"], lp["ao_w"], lp["vec_h"],
      lp["inter_b"], lp["inter_w"], lp["out_w"])


def _pooler_kernel(x_ref, w_ref, b_ref, o_ref):
    y = jnp.dot(x_ref[...].astype(jnp.bfloat16), w_ref[...],
                preferred_element_type=jnp.float32) + b_ref[...]
    o_ref[...] = jnp.tanh(y)


def pooler(x, w_bf16, b2d):
    """x:[B,H] f32 -> tanh(x @ w + b):[B,H] f32."""
    B, H = x.shape
    return pl.pallas_call(
        _pooler_kernel,
        out_shape=jax.ShapeDtypeStruct((B, H), jnp.float32),
        in_specs=[
            pl.BlockSpec((B, H), lambda: (0, 0)),
            pl.BlockSpec((H, H), lambda: (0, 0)),
            pl.BlockSpec((1, H), lambda: (0, 0)),
        ],
        out_specs=pl.BlockSpec((B, H), lambda: (0, 0)),
    )(x, w_bf16, b2d)


# ---------------------------------------------------------------------------
# Parameters (standard f32 layout + a one-time packed/bf16 device layout)
# ---------------------------------------------------------------------------
def init_params(key, cfg):
    H = cfg["hidden_size"]
    I = cfg["intermediate_size"]
    keys = iter(jax.random.split(key, 64))

    def w(shape):
        return (0.02 * jax.random.normal(next(keys), shape)).astype(jnp.float32)

    def zeros(n):
        return jnp.zeros((n,), jnp.float32)

    def ones(n):
        return jnp.ones((n,), jnp.float32)

    params = {
        "word_emb": w((cfg["vocab_size"], H)),
        "pos_emb": w((cfg["max_position_embeddings"], H)),
        "type_emb": w((cfg["type_vocab_size"], H)),
        "emb_ln_g": ones(H),
        "emb_ln_b": zeros(H),
        "pooler_w": w((H, H)),
        "pooler_b": zeros(H),
        "layers": [],
    }
    for _ in range(cfg["num_hidden_layers"]):
        params["layers"].append(
            {
                "q_w": w((H, H)), "q_b": zeros(H),
                "k_w": w((H, H)), "k_b": zeros(H),
                "v_w": w((H, H)), "v_b": zeros(H),
                "ao_w": w((H, H)), "ao_b": zeros(H),
                "attn_ln_g": ones(H), "attn_ln_b": zeros(H),
                "inter_w": w((H, I)), "inter_b": zeros(I),
                "out_w": w((I, H)), "out_b": zeros(H),
                "out_ln_g": ones(H), "out_ln_b": zeros(H),
            }
        )
    return params


def pack_params(params, cfg):
    """One-time repack: fused Q/K/V weight (scale folded into Q), bf16 matmul
    weights, 2-D bias/LayerNorm vectors."""
    H = cfg["hidden_size"]
    heads = cfg["num_attention_heads"]
    dh = H // heads
    scale = 1.0 / math.sqrt(dh)
    bf = jnp.bfloat16

    packed = {
        "word_emb": params["word_emb"],
        "pos_emb": params["pos_emb"],
        "type_emb": params["type_emb"],
        "emb_ln_g": params["emb_ln_g"].reshape(1, H),
        "emb_ln_b": params["emb_ln_b"].reshape(1, H),
        "pooler_w": params["pooler_w"].astype(bf),
        "pooler_b": params["pooler_b"].reshape(1, H),
        "layers": [],
    }
    for lp in params["layers"]:
        # Columns [0:H]=Q (pre-scaled), [H:2H]=K, [2H:3H]=V; head hd owns the
        # dh-wide column slice hd*dh:(hd+1)*dh inside each group.
        qkv_w = jnp.concatenate(
            [lp["q_w"] * scale, lp["k_w"], lp["v_w"]], axis=1
        ).astype(bf)                                              # [H, 3H]
        qkv_b = jnp.concatenate(
            [lp["q_b"] * scale, lp["k_b"], lp["v_b"]], axis=0
        ).reshape(1, 3 * H)                                       # [1, 3H]
        vec_h = jnp.stack(
            [lp["ao_b"], lp["attn_ln_g"], lp["attn_ln_b"],
             lp["out_b"], lp["out_ln_g"], lp["out_ln_b"]], axis=0)  # [6, H]
        packed["layers"].append({
            "qkv_w": qkv_w, "qkv_b": qkv_b,
            "ao_w": lp["ao_w"].astype(bf),
            "vec_h": vec_h,
            "inter_w": lp["inter_w"].astype(bf),
            "inter_b": lp["inter_b"].reshape(1, -1),
            "out_w": lp["out_w"].astype(bf),
        })
    return packed


# ---------------------------------------------------------------------------
# Forward (single-input path of BertModel4Mix.forward, eval mode)
# ---------------------------------------------------------------------------
def bert_model4mix_forward(packed, input_ids, attention_mask, token_type_ids, cfg):
    B, S = input_ids.shape
    H = cfg["hidden_size"]
    heads = cfg["num_attention_heads"]

    if attention_mask is None:
        attention_mask = jnp.ones_like(input_ids)
    if token_type_ids is None:
        token_type_ids = jnp.zeros_like(input_ids)

    # extended_attention_mask = (1 - mask)[:, None, None, :] * -10000
    mask_f = ((1.0 - attention_mask.astype(jnp.float32)) * -10000.0).reshape(B, 1, S)

    # BertEmbeddings: gathers stay in XLA; single LayerNorm kernel (no zero residual).
    pos = jnp.arange(S, dtype=jnp.int32)
    emb_sum = (
        packed["word_emb"][input_ids]
        + packed["pos_emb"][pos][None, :, :]
        + packed["type_emb"][token_type_ids]
    )
    emb2d = layernorm(emb_sum.reshape(B * S, H), packed["emb_ln_g"], packed["emb_ln_b"])
    embedding_output = emb2d.reshape(B, S, H)

    # BertEncoder4Mix (output_hidden_states=True; no mixing for default args)
    all_hidden_states = (embedding_output,)
    h2d = emb2d
    for lp in packed["layers"]:
        h2d = bert_layer(h2d, mask_f, lp, B=B, S=S, heads=heads)
        all_hidden_states = all_hidden_states + (h2d.reshape(B, S, H),)

    sequence_output = h2d.reshape(B, S, H)

    # BertPooler: dense + tanh on the first token
    pooled_output = pooler(sequence_output[:, 0, :], packed["pooler_w"], packed["pooler_b"])

    return sequence_output, pooled_output, embedding_output, all_hidden_states


if __name__ == "__main__":
    key = jax.random.PRNGKey(0)
    pkey, ikey, tkey = jax.random.split(key, 3)

    params = init_params(pkey, CFG)
    packed = pack_params(params, CFG)          # one-time bf16 / fused-QKV repack

    B, S = 2, 8
    input_ids = jax.random.randint(ikey, (B, S), 0, CFG["vocab_size"], dtype=jnp.int32)
    token_type_ids = jax.random.randint(tkey, (B, S), 0, CFG["type_vocab_size"], dtype=jnp.int32)
    # mask out the last two tokens of the second example
    attention_mask = jnp.ones((B, S), jnp.int32).at[1, -2:].set(0)

    fwd = jax.jit(lambda p, ids, am, tt: bert_model4mix_forward(p, ids, am, tt, CFG))
    seq_out, pooled, emb_out, all_hidden = fwd(packed, input_ids, attention_mask, token_type_ids)

    jax.block_until_ready((seq_out, pooled, emb_out, all_hidden))

    assert seq_out.shape == (B, S, CFG["hidden_size"])
    assert pooled.shape == (B, CFG["hidden_size"])
    assert emb_out.shape == (B, S, CFG["hidden_size"])
    assert len(all_hidden) == CFG["num_hidden_layers"] + 1
    assert bool(jnp.all(jnp.isfinite(seq_out))) and bool(jnp.all(jnp.isfinite(pooled)))

    print("KERNEL_OK")
</pallas_src>

<mosaic_0001>
module attributes {stable_mosaic.version = 11 : i64} {
  func.func @_ln_kernel(%arg0: memref<16x32xf32, #tpu.memory_space<vmem>>, %arg1: memref<1x32xf32, #tpu.memory_space<vmem>>, %arg2: memref<1x32xf32, #tpu.memory_space<vmem>>, %arg3: memref<16x32xf32, #tpu.memory_space<vmem>>) attributes {dimension_semantics = [], scalar_prefetch = 0 : i64, scratch_operands = 0 : i64, tpu.core_type = #tpu.core_type<tc>} {
    %c0 = arith.constant 0 : index
    %c0_0 = arith.constant 0 : index
    %0 = vector.load %arg0[%c0, %c0_0] : memref<16x32xf32, #tpu.memory_space<vmem>>, vector<16x32xf32>
    %c0_1 = arith.constant 0 : index
    %c0_2 = arith.constant 0 : index
    %1 = vector.load %arg1[%c0_1, %c0_2] : memref<1x32xf32, #tpu.memory_space<vmem>>, vector<1x32xf32>
    %c0_3 = arith.constant 0 : index
    %c0_4 = arith.constant 0 : index
    %2 = vector.load %arg2[%c0_3, %c0_4] : memref<1x32xf32, #tpu.memory_space<vmem>>, vector<1x32xf32>
    %cst = arith.constant dense<0.000000e+00> : vector<16xf32>
    %3 = vector.multi_reduction <add>, %0, %cst [1] : vector<16x32xf32> to vector<16xf32>
    %4 = vector.shape_cast %3 : vector<16xf32> to vector<16x1xf32>
    %cst_5 = arith.constant 3.200000e+01 : f32
    %5 = vector.broadcast %cst_5 : f32 to vector<16x1xf32>
    %6 = arith.divf %4, %5 : vector<16x1xf32>
    %7 = vector.broadcast %6 : vector<16x1xf32> to vector<16x32xf32>
    %8 = arith.subf %0, %7 : vector<16x32xf32>
    %9 = arith.mulf %8, %8 : vector<16x32xf32>
    %cst_6 = arith.constant dense<0.000000e+00> : vector<16xf32>
    %10 = vector.multi_reduction <add>, %9, %cst_6 [1] : vector<16x32xf32> to vector<16xf32>
    %11 = vector.shape_cast %10 : vector<16xf32> to vector<16x1xf32>
    %cst_7 = arith.constant 3.200000e+01 : f32
    %12 = vector.broadcast %cst_7 : f32 to vector<16x1xf32>
    %13 = arith.divf %11, %12 : vector<16x1xf32>
    %14 = vector.broadcast %6 : vector<16x1xf32> to vector<16x32xf32>
    %15 = arith.subf %0, %14 : vector<16x32xf32>
    %cst_8 = arith.constant 9.99999996E-13 : f32
    %16 = vector.broadcast %cst_8 : f32 to vector<16x1xf32>
    %17 = arith.addf %13, %16 : vector<16x1xf32>
    %18 = math.rsqrt %17 : vector<16x1xf32>
    %19 = vector.broadcast %18 : vector<16x1xf32> to vector<16x32xf32>
    %20 = arith.mulf %15, %19 : vector<16x32xf32>
    %21 = vector.broadcast %1 : vector<1x32xf32> to vector<16x32xf32>
    %22 = arith.mulf %20, %21 : vector<16x32xf32>
    %23 = vector.broadcast %2 : vector<1x32xf32> to vector<16x32xf32>
    %24 = arith.addf %22, %23 : vector<16x32xf32>
    %c0_9 = arith.constant 0 : index
    %c0_10 = arith.constant 0 : index
    %25 = vector.load %arg3[%c0_9, %c0_10] : memref<16x32xf32, #tpu.memory_space<vmem>>, vector<16x32xf32>
    tpu.vector_store %arg3[%c0_9, %c0_10], %24 {strides = array<i32>} : memref<16x32xf32, #tpu.memory_space<vmem>>, vector<16x32xf32>,
    return
  }
}

module attributes {stable_mosaic.version = 11 : i64} {
  func.func @_pooler_kernel(%arg0: memref<2x32xf32, #tpu.memory_space<vmem>>, %arg1: memref<32x32xbf16, #tpu.memory_space<vmem>>, %arg2: memref<1x32xf32, #tpu.memory_space<vmem>>, %arg3: memref<2x32xf32, #tpu.memory_space<vmem>>) attributes {dimension_semantics = [], scalar_prefetch = 0 : i64, scratch_operands = 0 : i64, tpu.core_type = #tpu.core_type<tc>} {
    %c0 = arith.constant 0 : index
    %c0_0 = arith.constant 0 : index
    %0 = vector.load %arg0[%c0, %c0_0] : memref<2x32xf32, #tpu.memory_space<vmem>>, vector<2x32xf32>
    %1 = arith.truncf %0 : vector<2x32xf32> to vector<2x32xbf16>
    %c0_1 = arith.constant 0 : index
    %c0_2 = arith.constant 0 : index
    %2 = vector.load %arg1[%c0_1, %c0_2] : memref<32x32xbf16, #tpu.memory_space<vmem>>, vector<32x32xbf16>
    %cst = arith.constant dense<0.000000e+00> : vector<2x32xf32>
    %3 = tpu.matmul %1, %2, %cst {dimension_numbers = #tpu.dot_dimension_numbers<[1], [0], [0], [1], [0, 0, 1, 1], [], []>} : vector<2x32xbf16>, vector<32x32xbf16>, vector<2x32xf32> -> vector<2x32xf32>
    %c0_3 = arith.constant 0 : index
    %c0_4 = arith.constant 0 : index
    %4 = vector.load %arg2[%c0_3, %c0_4] : memref<1x32xf32, #tpu.memory_space<vmem>>, vector<1x32xf32>
    %5 = vector.broadcast %4 : vector<1x32xf32> to vector<2x32xf32>
    %6 = arith.addf %3, %5 : vector<2x32xf32>
    %7 = math.tanh %6 : vector<2x32xf32>
    %c0_5 = arith.constant 0 : index
    %c0_6 = arith.constant 0 : index
    %8 = vector.load %arg3[%c0_5, %c0_6] : memref<2x32xf32, #tpu.memory_space<vmem>>, vector<2x32xf32>
    tpu.vector_store %arg3[%c0_5, %c0_6], %7 {strides = array<i32>} : memref<2x32xf32, #tpu.memory_space<vmem>>, vector<2x32xf32>,
    return
  }
}

module attributes {stable_mosaic.version = 11 : i64} {
  func.func @_layer_kernel(%arg0: i32, %arg1: memref<8x32xf32, #tpu.memory_space<vmem>>, %arg2: memref<1x1x8xf32, #tpu.memory_space<vmem>>, %arg3: memref<32x96xbf16, #tpu.memory_space<vmem>>, %arg4: memref<1x96xf32, #tpu.memory_space<vmem>>, %arg5: memref<32x32xbf16, #tpu.memory_space<vmem>>, %arg6: memref<6x32xf32, #tpu.memory_space<vmem>>, %arg7: memref<1x64xf32, #tpu.memory_space<vmem>>, %arg8: memref<32x64xbf16, #tpu.memory_space<vmem>>, %arg9: memref<64x32xbf16, #tpu.memory_space<vmem>>, %arg10: memref<8x32xf32, #tpu.memory_space<vmem>>) attributes {dimension_semantics = [#tpu.dimension_semantics<parallel>], iteration_bounds = array<i64: 2>, scalar_prefetch = 0 : i64, scratch_operands = 0 : i64, tpu.core_type = #tpu.core_type<tc>, window_params = [{transform_indices = @transform_0, window_bounds = array<i64: 8, 32>}, {transform_indices = @transform_1, window_bounds = array<i64: 1, 1, 8>}, {pipeline_mode = #tpu.pipeline_mode<synchronous>, transform_indices = @transform_2, window_bounds = array<i64: 32, 96>}, {pipeline_mode = #tpu.pipeline_mode<synchronous>, transform_indices = @transform_3, window_bounds = array<i64: 1, 96>}, {pipeline_mode = #tpu.pipeline_mode<synchronous>, transform_indices = @transform_4, window_bounds = array<i64: 32, 32>}, {pipeline_mode = #tpu.pipeline_mode<synchronous>, transform_indices = @transform_5, window_bounds = array<i64: 6, 32>}, {pipeline_mode = #tpu.pipeline_mode<synchronous>, transform_indices = @transform_6, window_bounds = array<i64: 1, 64>}, {pipeline_mode = #tpu.pipeline_mode<synchronous>, transform_indices = @transform_7, window_bounds = array<i64: 32, 64>}, {pipeline_mode = #tpu.pipeline_mode<synchronous>, transform_indices = @transform_8, window_bounds = array<i64: 64, 32>}, {transform_indices = @transform_9, window_bounds = array<i64: 8, 32>}]} {
    %c0 = arith.constant 0 : index
    %c0_0 = arith.constant 0 : index
    %0 = vector.load %arg1[%c0, %c0_0] : memref<8x32xf32, #tpu.memory_space<vmem>>, vector<8x32xf32>
    %1 = arith.truncf %0 : vector<8x32xf32> to vector<8x32xbf16>
    %c0_1 = arith.constant 0 : index
    %c0_2 = arith.constant 0 : index
    %c0_3 = arith.constant 0 : index
    %2 = vector.load %arg2[%c0_1, %c0_2, %c0_3] : memref<1x1x8xf32, #tpu.memory_space<vmem>>, vector<1x1x8xf32>
    %3 = vector.shape_cast %2 : vector<1x1x8xf32> to vector<1x8xf32>
    %c0_4 = arith.constant 0 : index
    %c0_5 = arith.constant 0 : index
    %4 = vector.load %arg6[%c0_4, %c0_5] : memref<6x32xf32, #tpu.memory_space<vmem>>, vector<6x32xf32>
    %5 = vector.extract_strided_slice %4 {offsets = [0, 0], sizes = [1, 32], strides = [1, 1]} : vector<6x32xf32> to vector<1x32xf32>
    %6 = vector.extract_strided_slice %4 {offsets = [1, 0], sizes = [1, 32], strides = [1, 1]} : vector<6x32xf32> to vector<1x32xf32>
    %7 = vector.extract_strided_slice %4 {offsets = [2, 0], sizes = [1, 32], strides = [1, 1]} : vector<6x32xf32> to vector<1x32xf32>
    %8 = vector.extract_strided_slice %4 {offsets = [3, 0], sizes = [1, 32], strides = [1, 1]} : vector<6x32xf32> to vector<1x32xf32>
    %9 = vector.extract_strided_slice %4 {offsets = [4, 0], sizes = [1, 32], strides = [1, 1]} : vector<6x32xf32> to vector<1x32xf32>
    %10 = vector.extract_strided_slice %4 {offsets = [5, 0], sizes = [1, 32], strides = [1, 1]} : vector<6x32xf32> to vector<1x32xf32>
    %c0_6 = arith.constant 0 : index
    %c0_7 = arith.constant 0 : index
    %11 = vector.load %arg3[%c0_6, %c0_7] : memref<32x96xbf16, #tpu.memory_space<vmem>>, vector<32x96xbf16>
    %cst = arith.constant dense<0.000000e+00> : vector<8x96xf32>
    %12 = tpu.matmul %1, %11, %cst {dimension_numbers = #tpu.dot_dimension_numbers<[1], [0], [0], [1], [0, 0, 1, 1], [], []>} : vector<8x32xbf16>, vector<32x96xbf16>, vector<8x96xf32> -> vector<8x96xf32>
    %c0_8 = arith.constant 0 : index
    %c0_9 = arith.constant 0 : index
    %13 = vector.load %arg4[%c0_8, %c0_9] : memref<1x96xf32, #tpu.memory_space<vmem>>, vector<1x96xf32>
    %14 = vector.broadcast %13 : vector<1x96xf32> to vector<8x96xf32>
    %15 = arith.addf %12, %14 : vector<8x96xf32>
    %16 = vector.extract_strided_slice %15 {offsets = [0, 0], sizes = [8, 8], strides = [1, 1]} : vector<8x96xf32> to vector<8x8xf32>
    %17 = vector.extract_strided_slice %15 {offsets = [0, 32], sizes = [8, 8], strides = [1, 1]} : vector<8x96xf32> to vector<8x8xf32>
    %18 = vector.extract_strided_slice %15 {offsets = [0, 64], sizes = [8, 8], strides = [1, 1]} : vector<8x96xf32> to vector<8x8xf32>
    %19 = tpu.transpose %17, [1, 0] : vector<8x8xf32> -> vector<8x8xf32>
    %cst_10 = arith.constant dense<0.000000e+00> : vector<8x8xf32>
    %20 = tpu.matmul %16, %19, %cst_10 {dimension_numbers = #tpu.dot_dimension_numbers<[1], [0], [0], [1], [0, 0, 1, 1], [], []>} : vector<8x8xf32>, vector<8x8xf32>, vector<8x8xf32> -> vector<8x8xf32>
    %21 = vector.broadcast %3 : vector<1x8xf32> to vector<8x8xf32>
    %22 = arith.addf %20, %21 : vector<8x8xf32>
    %cst_11 = arith.constant dense<0xFF800000> : vector<8xf32>
    %23 = vector.multi_reduction <maximumf>, %22, %cst_11 [1] : vector<8x8xf32> to vector<8xf32>
    %24 = vector.shape_cast %23 : vector<8xf32> to vector<8x1xf32>
    %25 = vector.broadcast %24 : vector<8x1xf32> to vector<8x8xf32>
    %26 = arith.subf %22, %25 : vector<8x8xf32>
    %27 = math.exp %26 : vector<8x8xf32>
    %cst_12 = arith.constant dense<0.000000e+00> : vector<8xf32>
    %28 = vector.multi_reduction <add>, %27, %cst_12 [1] : vector<8x8xf32> to vector<8xf32>
    %29 = vector.shape_cast %28 : vector<8xf32> to vector<8x1xf32>
    %30 = tpu.reciprocal %29 {approx = true} : vector<8x1xf32> -> vector<8x1xf32>
    %31 = vector.broadcast %30 : vector<8x1xf32> to vector<8x8xf32>
    %32 = arith.mulf %27, %31 : vector<8x8xf32>
    %cst_13 = arith.constant dense<0.000000e+00> : vector<8x8xf32>
    %33 = tpu.matmul %32, %18, %cst_13 {dimension_numbers = #tpu.dot_dimension_numbers<[1], [0], [0], [1], [0, 0, 1, 1], [], []>} : vector<8x8xf32>, vector<8x8xf32>, vector<8x8xf32> -> vector<8x8xf32>
    %34 = vector.extract_strided_slice %15 {offsets = [0, 8], sizes = [8, 8], strides = [1, 1]} : vector<8x96xf32> to vector<8x8xf32>
    %35 = vector.extract_strided_slice %15 {offsets = [0, 40], sizes = [8, 8], strides = [1, 1]} : vector<8x96xf32> to vector<8x8xf32>
    %36 = vector.extract_strided_slice %15 {offsets = [0, 72], sizes = [8, 8], strides = [1, 1]} : vector<8x96xf32> to vector<8x8xf32>
    %37 = tpu.transpose %35, [1, 0] : vector<8x8xf32> -> vector<8x8xf32>
    %cst_14 = arith.constant dense<0.000000e+00> : vector<8x8xf32>
    %38 = tpu.matmul %34, %37, %cst_14 {dimension_numbers = #tpu.dot_dimension_numbers<[1], [0], [0], [1], [0, 0, 1, 1], [], []>} : vector<8x8xf32>, vector<8x8xf32>, vector<8x8xf32> -> vector<8x8xf32>
    %39 = vector.broadcast %3 : vector<1x8xf32> to vector<8x8xf32>
    %40 = arith.addf %38, %39 : vector<8x8xf32>
    %cst_15 = arith.constant dense<0xFF800000> : vector<8xf32>
    %41 = vector.multi_reduction <maximumf>, %40, %cst_15 [1] : vector<8x8xf32> to vector<8xf32>
    %42 = vector.shape_cast %41 : vector<8xf32> to vector<8x1xf32>
    %43 = vector.broadcast %42 : vector<8x1xf32> to vector<8x8xf32>
    %44 = arith.subf %40, %43 : vector<8x8xf32>
    %45 = math.exp %44 : vector<8x8xf32>
    %cst_16 = arith.constant dense<0.000000e+00> : vector<8xf32>
    %46 = vector.multi_reduction <add>, %45, %cst_16 [1] : vector<8x8xf32> to vector<8xf32>
    %47 = vector.shape_cast %46 : vector<8xf32> to vector<8x1xf32>
    %48 = tpu.reciprocal %47 {approx = true} : vector<8x1xf32> -> vector<8x1xf32>
    %49 = vector.broadcast %48 : vector<8x1xf32> to vector<8x8xf32>
    %50 = arith.mulf %45, %49 : vector<8x8xf32>
    %cst_17 = arith.constant dense<0.000000e+00> : vector<8x8xf32>
    %51 = tpu.matmul %50, %36, %cst_17 {dimension_numbers = #tpu.dot_dimension_numbers<[1], [0], [0], [1], [0, 0, 1, 1], [], []>} : vector<8x8xf32>, vector<8x8xf32>, vector<8x8xf32> -> vector<8x8xf32>
    %52 = vector.extract_strided_slice %15 {offsets = [0, 16], sizes = [8, 8], strides = [1, 1]} : vector<8x96xf32> to vector<8x8xf32>
    %53 = vector.extract_strided_slice %15 {offsets = [0, 48], sizes = [8, 8], strides = [1, 1]} : vector<8x96xf32> to vector<8x8xf32>
    %54 = vector.extract_strided_slice %15 {offsets = [0, 80], sizes = [8, 8], strides = [1, 1]} : vector<8x96xf32> to vector<8x8xf32>
    %55 = tpu.transpose %53, [1, 0] : vector<8x8xf32> -> vector<8x8xf32>
    %cst_18 = arith.constant dense<0.000000e+00> : vector<8x8xf32>
    %56 = tpu.matmul %52, %55, %cst_18 {dimension_numbers = #tpu.dot_dimension_numbers<[1], [0], [0], [1], [0, 0, 1, 1], [], []>} : vector<8x8xf32>, vector<8x8xf32>, vector<8x8xf32> -> vector<8x8xf32>
    %57 = vector.broadcast %3 : vector<1x8xf32> to vector<8x8xf32>
    %58 = arith.addf %56, %57 : vector<8x8xf32>
    %cst_19 = arith.constant dense<0xFF800000> : vector<8xf32>
    %59 = vector.multi_reduction <maximumf>, %58, %cst_19 [1] : vector<8x8xf32> to vector<8xf32>
    %60 = vector.shape_cast %59 : vector<8xf32> to vector<8x1xf32>
    %61 = vector.broadcast %60 : vector<8x1xf32> to vector<8x8xf32>
    %62 = arith.subf %58, %61 : vector<8x8xf32>
    %63 = math.exp %62 : vector<8x8xf32>
    %cst_20 = arith.constant dense<0.000000e+00> : vector<8xf32>
    %64 = vector.multi_reduction <add>, %63, %cst_20 [1] : vector<8x8xf32> to vector<8xf32>
    %65 = vector.shape_cast %64 : vector<8xf32> to vector<8x1xf32>
    %66 = tpu.reciprocal %65 {approx = true} : vector<8x1xf32> -> vector<8x1xf32>
    %67 = vector.broadcast %66 : vector<8x1xf32> to vector<8x8xf32>
    %68 = arith.mulf %63, %67 : vector<8x8xf32>
    %cst_21 = arith.constant dense<0.000000e+00> : vector<8x8xf32>
    %69 = tpu.matmul %68, %54, %cst_21 {dimension_numbers = #tpu.dot_dimension_numbers<[1], [0], [0], [1], [0, 0, 1, 1], [], []>} : vector<8x8xf32>, vector<8x8xf32>, vector<8x8xf32> -> vector<8x8xf32>
    %70 = vector.extract_strided_slice %15 {offsets = [0, 24], sizes = [8, 8], strides = [1, 1]} : vector<8x96xf32> to vector<8x8xf32>
    %71 = vector.extract_strided_slice %15 {offsets = [0, 56], sizes = [8, 8], strides = [1, 1]} : vector<8x96xf32> to vector<8x8xf32>
    %72 = vector.extract_strided_slice %15 {offsets = [0, 88], sizes = [8, 8], strides = [1, 1]} : vector<8x96xf32> to vector<8x8xf32>
    %73 = tpu.transpose %71, [1, 0] : vector<8x8xf32> -> vector<8x8xf32>
    %cst_22 = arith.constant dense<0.000000e+00> : vector<8x8xf32>
    %74 = tpu.matmul %70, %73, %cst_22 {dimension_numbers = #tpu.dot_dimension_numbers<[1], [0], [0], [1], [0, 0, 1, 1], [], []>} : vector<8x8xf32>, vector<8x8xf32>, vector<8x8xf32> -> vector<8x8xf32>
    %75 = vector.broadcast %3 : vector<1x8xf32> to vector<8x8xf32>
    %76 = arith.addf %74, %75 : vector<8x8xf32>
    %cst_23 = arith.constant dense<0xFF800000> : vector<8xf32>
    %77 = vector.multi_reduction <maximumf>, %76, %cst_23 [1] : vector<8x8xf32> to vector<8xf32>
    %78 = vector.shape_cast %77 : vector<8xf32> to vector<8x1xf32>
    %79 = vector.broadcast %78 : vector<8x1xf32> to vector<8x8xf32>
    %80 = arith.subf %76, %79 : vector<8x8xf32>
    %81 = math.exp %80 : vector<8x8xf32>
    %cst_24 = arith.constant dense<0.000000e+00> : vector<8xf32>
    %82 = vector.multi_reduction <add>, %81, %cst_24 [1] : vector<8x8xf32> to vector<8xf32>
    %83 = vector.shape_cast %82 : vector<8xf32> to vector<8x1xf32>
    %84 = tpu.reciprocal %83 {approx = true} : vector<8x1xf32> -> vector<8x1xf32>
    %85 = vector.broadcast %84 : vector<8x1xf32> to vector<8x8xf32>
    %86 = arith.mulf %81, %85 : vector<8x8xf32>
    %cst_25 = arith.constant dense<0.000000e+00> : vector<8x8xf32>
    %87 = tpu.matmul %86, %72, %cst_25 {dimension_numbers = #tpu.dot_dimension_numbers<[1], [0], [0], [1], [0, 0, 1, 1], [], []>} : vector<8x8xf32>, vector<8x8xf32>, vector<8x8xf32> -> vector<8x8xf32>
    %88 = tpu.concatenate %33, %51, %69, %87 in 1 : vector<8x8xf32>, vector<8x8xf32>, vector<8x8xf32>, vector<8x8xf32> -> vector<8x32xf32>
    %89 = arith.truncf %88 : vector<8x32xf32> to vector<8x32xbf16>
    %c0_26 = arith.constant 0 : index
    %c0_27 = arith.constant 0 : index
    %90 = vector.load %arg5[%c0_26, %c0_27] : memref<32x32xbf16, #tpu.memory_space<vmem>>, vector<32x32xbf16>
    %cst_28 = arith.constant dense<0.000000e+00> : vector<8x32xf32>
    %91 = tpu.matmul %89, %90, %cst_28 {dimension_numbers = #tpu.dot_dimension_numbers<[1], [0], [0], [1], [0, 0, 1, 1], [], []>} : vector<8x32xbf16>, vector<32x32xbf16>, vector<8x32xf32> -> vector<8x32xf32>
    %92 = vector.broadcast %5 : vector<1x32xf32> to vector<8x32xf32>
    %93 = arith.addf %91, %92 : vector<8x32xf32>
    %94 = arith.addf %93, %0 : vector<8x32xf32>
    %cst_29 = arith.constant dense<0.000000e+00> : vector<8xf32>
    %95 = vector.multi_reduction <add>, %94, %cst_29 [1] : vector<8x32xf32> to vector<8xf32>
    %96 = vector.shape_cast %95 : vector<8xf32> to vector<8x1xf32>
    %cst_30 = arith.constant 3.200000e+01 : f32
    %97 = vector.broadcast %cst_30 : f32 to vector<8x1xf32>
    %98 = arith.divf %96, %97 : vector<8x1xf32>
    %99 = vector.broadcast %98 : vector<8x1xf32> to vector<8x32xf32>
    %100 = arith.subf %94, %99 : vector<8x32xf32>
    %101 = arith.mulf %100, %100 : vector<8x32xf32>
    %cst_31 = arith.constant dense<0.000000e+00> : vector<8xf32>
    %102 = vector.multi_reduction <add>, %101, %cst_31 [1] : vector<8x32xf32> to vector<8xf32>
    %103 = vector.shape_cast %102 : vector<8xf32> to vector<8x1xf32>
    %cst_32 = arith.constant 3.200000e+01 : f32
    %104 = vector.broadcast %cst_32 : f32 to vector<8x1xf32>
    %105 = arith.divf %103, %104 : vector<8x1xf32>
    %106 = vector.broadcast %98 : vector<8x1xf32> to vector<8x32xf32>
    %107 = arith.subf %94, %106 : vector<8x32xf32>
    %cst_33 = arith.constant 9.99999996E-13 : f32
    %108 = vector.broadcast %cst_33 : f32 to vector<8x1xf32>
    %109 = arith.addf %105, %108 : vector<8x1xf32>
    %110 = math.rsqrt %109 : vector<8x1xf32>
    %111 = vector.broadcast %110 : vector<8x1xf32> to vector<8x32xf32>
    %112 = arith.mulf %107, %111 : vector<8x32xf32>
    %113 = vector.broadcast %6 : vector<1x32xf32> to vector<8x32xf32>
    %114 = arith.mulf %112, %113 : vector<8x32xf32>
    %115 = vector.broadcast %7 : vector<1x32xf32> to vector<8x32xf32>
    %116 = arith.addf %114, %115 : vector<8x32xf32>
    %117 = arith.truncf %116 : vector<8x32xf32> to vector<8x32xbf16>
    %c0_34 = arith.constant 0 : index
    %c0_35 = arith.constant 0 : index
    %118 = vector.load %arg8[%c0_34, %c0_35] : memref<32x64xbf16, #tpu.memory_space<vmem>>, vector<32x64xbf16>
    %cst_36 = arith.constant dense<0.000000e+00> : vector<8x64xf32>
    %119 = tpu.matmul %117, %118, %cst_36 {dimension_numbers = #tpu.dot_dimension_numbers<[1], [0], [0], [1], [0, 0, 1, 1], [], []>} : vector<8x32xbf16>, vector<32x64xbf16>, vector<8x64xf32> -> vector<8x64xf32>
    %c0_37 = arith.constant 0 : index
    %c0_38 = arith.constant 0 : index
    %120 = vector.load %arg7[%c0_37, %c0_38] : memref<1x64xf32, #tpu.memory_space<vmem>>, vector<1x64xf32>
    %121 = vector.broadcast %120 : vector<1x64xf32> to vector<8x64xf32>
    %122 = arith.addf %119, %121 : vector<8x64xf32>
    %cst_39 = arith.constant 5.000000e-01 : f32
    %123 = vector.broadcast %cst_39 : f32 to vector<8x64xf32>
    %124 = arith.mulf %123, %122 : vector<8x64xf32>
    %cst_40 = arith.constant 4.471500e-02 : f32
    %125 = vector.broadcast %cst_40 : f32 to vector<8x64xf32>
    %126 = arith.mulf %125, %122 : vector<8x64xf32>
    %127 = arith.mulf %126, %122 : vector<8x64xf32>
    %128 = arith.mulf %127, %122 : vector<8x64xf32>
    %129 = arith.addf %122, %128 : vector<8x64xf32>
    %cst_41 = arith.constant 0.797884583 : f32
    %130 = vector.broadcast %cst_41 : f32 to vector<8x64xf32>
    %131 = arith.mulf %130, %129 : vector<8x64xf32>
    %132 = math.tanh %131 : vector<8x64xf32>
    %cst_42 = arith.constant 1.000000e+00 : f32
    %133 = vector.broadcast %cst_42 : f32 to vector<8x64xf32>
    %134 = arith.addf %133, %132 : vector<8x64xf32>
    %135 = arith.mulf %124, %134 : vector<8x64xf32>
    %136 = arith.truncf %135 : vector<8x64xf32> to vector<8x64xbf16>
    %c0_43 = arith.constant 0 : index
    %c0_44 = arith.constant 0 : index
    %137 = vector.load %arg9[%c0_43, %c0_44] : memref<64x32xbf16, #tpu.memory_space<vmem>>, vector<64x32xbf16>
    %cst_45 = arith.constant dense<0.000000e+00> : vector<8x32xf32>
    %138 = tpu.matmul %136, %137, %cst_45 {dimension_numbers = #tpu.dot_dimension_numbers<[1], [0], [0], [1], [0, 0, 1, 1], [], []>} : vector<8x64xbf16>, vector<64x32xbf16>, vector<8x32xf32> -> vector<8x32xf32>
    %139 = vector.broadcast %8 : vector<1x32xf32> to vector<8x32xf32>
    %140 = arith.addf %138, %139 : vector<8x32xf32>
    %141 = arith.addf %140, %116 : vector<8x32xf32>
    %cst_46 = arith.constant dense<0.000000e+00> : vector<8xf32>
    %142 = vector.multi_reduction <add>, %141, %cst_46 [1] : vector<8x32xf32> to vector<8xf32>
    %143 = vector.shape_cast %142 : vector<8xf32> to vector<8x1xf32>
    %cst_47 = arith.constant 3.200000e+01 : f32
    %144 = vector.broadcast %cst_47 : f32 to vector<8x1xf32>
    %145 = arith.divf %143, %144 : vector<8x1xf32>
    %146 = vector.broadcast %145 : vector<8x1xf32> to vector<8x32xf32>
    %147 = arith.subf %141, %146 : vector<8x32xf32>
    %148 = arith.mulf %147, %147 : vector<8x32xf32>
    %cst_48 = arith.constant dense<0.000000e+00> : vector<8xf32>
    %149 = vector.multi_reduction <add>, %148, %cst_48 [1] : vector<8x32xf32> to vector<8xf32>
    %150 = vector.shape_cast %149 : vector<8xf32> to vector<8x1xf32>
    %cst_49 = arith.constant 3.200000e+01 : f32
    %151 = vector.broadcast %cst_49 : f32 to vector<8x1xf32>
    %152 = arith.divf %150, %151 : vector<8x1xf32>
    %153 = vector.broadcast %145 : vector<8x1xf32> to vector<8x32xf32>
    %154 = arith.subf %141, %153 : vector<8x32xf32>
    %cst_50 = arith.constant 9.99999996E-13 : f32
    %155 = vector.broadcast %cst_50 : f32 to vector<8x1xf32>
    %156 = arith.addf %152, %155 : vector<8x1xf32>
    %157 = math.rsqrt %156 : vector<8x1xf32>
    %158 = vector.broadcast %157 : vector<8x1xf32> to vector<8x32xf32>
    %159 = arith.mulf %154, %158 : vector<8x32xf32>
    %160 = vector.broadcast %9 : vector<1x32xf32> to vector<8x32xf32>
    %161 = arith.mulf %159, %160 : vector<8x32xf32>
    %162 = vector.broadcast %10 : vector<1x32xf32> to vector<8x32xf32>
    %163 = arith.addf %161, %162 : vector<8x32xf32>
    %c0_51 = arith.constant 0 : index
    %c0_52 = arith.constant 0 : index
    %164 = vector.load %arg10[%c0_51, %c0_52] : memref<8x32xf32, #tpu.memory_space<vmem>>, vector<8x32xf32>
    tpu.vector_store %arg10[%c0_51, %c0_52], %163 {strides = array<i32>} : memref<8x32xf32, #tpu.memory_space<vmem>>, vector<8x32xf32>,
    return
  }
  func.func @transform_0(%arg0: i32) -> (i32, i32) {
    %c0_i32 = arith.constant 0 : i32
    %c0_i32_0 = arith.constant 0 : i32
    return %arg0, %c0_i32 : i32, i32
  }
  func.func @transform_1(%arg0: i32) -> (i32, i32, i32) {
    %c0_i32 = arith.constant 0 : i32
    %c0_i32_0 = arith.constant 0 : i32
    %c0_i32_1 = arith.constant 0 : i32
    return %arg0, %c0_i32, %c0_i32_0 : i32, i32, i32
  }
  func.func @transform_2(%arg0: i32) -> (i32, i32) {
    %c0_i32 = arith.constant 0 : i32
    %c0_i32_0 = arith.constant 0 : i32
    %c0_i32_1 = arith.constant 0 : i32
    return %c0_i32, %c0_i32_0 : i32, i32
  }
  func.func @transform_3(%arg0: i32) -> (i32, i32) {
    %c0_i32 = arith.constant 0 : i32
    %c0_i32_0 = arith.constant 0 : i32
    %c0_i32_1 = arith.constant 0 : i32
    return %c0_i32, %c0_i32_0 : i32, i32
  }
  func.func @transform_4(%arg0: i32) -> (i32, i32) {
    %c0_i32 = arith.constant 0 : i32
    %c0_i32_0 = arith.constant 0 : i32
    %c0_i32_1 = arith.constant 0 : i32
    return %c0_i32, %c0_i32_0 : i32, i32
  }
  func.func @transform_5(%arg0: i32) -> (i32, i32) {
    %c0_i32 = arith.constant 0 : i32
    %c0_i32_0 = arith.constant 0 : i32
    %c0_i32_1 = arith.constant 0 : i32
    return %c0_i32, %c0_i32_0 : i32, i32
  }
  func.func @transform_6(%arg0: i32) -> (i32, i32) {
    %c0_i32 = arith.constant 0 : i32
    %c0_i32_0 = arith.constant 0 : i32
    %c0_i32_1 = arith.constant 0 : i32
    return %c0_i32, %c0_i32_0 : i32, i32
  }
  func.func @transform_7(%arg0: i32) -> (i32, i32) {
    %c0_i32 = arith.constant 0 : i32
    %c0_i32_0 = arith.constant 0 : i32
    %c0_i32_1 = arith.constant 0 : i32
    return %c0_i32, %c0_i32_0 : i32, i32
  }
  func.func @transform_8(%arg0: i32) -> (i32, i32) {
    %c0_i32 = arith.constant 0 : i32
    %c0_i32_0 = arith.constant 0 : i32
    %c0_i32_1 = arith.constant 0 : i32
    return %c0_i32, %c0_i32_0 : i32, i32
  }
  func.func @transform_9(%arg0: i32) -> (i32, i32) {
    %c0_i32 = arith.constant 0 : i32
    %c0_i32_0 = arith.constant 0 : i32
    return %arg0, %c0_i32 : i32, i32
  }
}

</mosaic_0001>

<llo_original>
// kernel: _lambda_.7
$region0: #{_lambda_.7}
  #allocation0 [shape = 'u32[]', space=smem, size = 0x4, offset = 0x4, fixed_abs, tag = 'smem constant byte address 0x4 - core index']
  #allocation1 [shape = 'u32[72,128]{1,0:T(1,128)}', space=vmem, size = 0x9000, scoped, tag = 'internal scratch']
  %s0 = inlined_call_operand.vmem [shape: f32[2,32], index: 0, kind: input, shape index: {}]
  %s1 = inlined_call_operand.vmem [shape: bf16[32,32], index: 1, kind: input, shape index: {}]
  %s2 = inlined_call_operand.vmem [shape: f32[1,32], index: 2, kind: input, shape index: {}]
  %s3 = inlined_call_operand.hbm [shape: f32[2,32], index: 3, kind: output, shape index: {}]
  %s4 = sld [smem:[#allocation0]]
  $region22: #{_lambda_.7} parent=0
    _
  %s6 = ssub.s32 1, %s4
  %s7 = scalar_select 0, %s6, %s4
  $region1: #{_lambda_.7} parent=0
    #allocation2 [shape = 'u8[1024]{0}', space=vmem, size = 0x400, scoped, tag = 'output window, operand 0, single buffered']
    #allocation3 [shape = 's32[1]{0}', space=sflag, size = 0x4, scoped, tag = 'scoped memory for _lambda_.7']
    %8 = vsyncpa [#allocation3], 0
    // Predicated region
    $region2: #{_lambda_.7} parent=1 // pred_check
      _
    $region3: #{_lambda_.7} parent=1 // pred_check_branch
      %10 = sbr.rel (0) target = $region5
    $region4: #{_lambda_.7} parent=1 // pred_region
      _
    $region5: #{_lambda_.7} parent=1 // pred_fallthru
      _
    // Predicated region
    $region6: #{_lambda_.7} parent=1 // pred_check
      _
    $region7: #{_lambda_.7} parent=1 // pred_check_branch
      %12 = sbr.rel (0) target = $region9
    $region8: #{_lambda_.7} parent=1 // pred_region
      _
    $region9: #{_lambda_.7} parent=1 // pred_fallthru
      _
    // Predicated region
    $region10: #{_lambda_.7} parent=1 // pred_check
      _
    $region11: #{_lambda_.7} parent=1 // pred_check_branch
      %14 = sbr.rel (0) target = $region13
    $region12: #{_lambda_.7} parent=1 // pred_region
      _
    $region13: #{_lambda_.7} parent=1 // pred_fallthru
      _
    %v16 = vld [vmem:[%s0] sm:$0x3]
    %v17 = vpack.c.bf16 %v16, %v16
    %v18 = vld [vmem:[%s1] sm:$0xf]
    %v19 = vld [vmem:[%s1 + $0x4] sm:$0xf]
    %v20 = vld [vmem:[%s1 + $0x8] sm:$0xf]
    %v21 = vld [vmem:[%s1 + $0xc] sm:$0xf]
    %v22 = vld [vmem:[%s2] sm:$0x1]
    %v24 = vperm.slane %v22, 0
    %v30 = vunpack.c.l.b16 %v18
    %v31 = vunpack.c.l.b16 %v19
    %v32 = vunpack.c.l.b16 %v20
    %v33 = vunpack.c.l.b16 %v21
    %v34 = vpack.c.b16 %v31, %v30
    %v35 = vpack.c.b16 %v33, %v32
    %vm38 = vcmask 261120
    %v40 = vsel %vm38, %v17, 0
    %42 = vmatpush.bf16.msra.mxu0 0
    %43 = vmatpush.bf16.msra.mxu0 0
    %44 = vmatpush.bf16.msra.mxu0 0
    %45 = vmatpush.bf16.msra.mxu0 0
    %46 = vmatpush.bf16.msra.mxu0 0
    %47 = vmatpush.bf16.msra.mxu0 0
    %48 = vmatpush.bf16.msra.mxu0 %v35
    %49 = vmatpush.bf16.msra.mxu0 %v34
    %50 = vmatmul.bf16.gmra.mxu0 %v40
    %v51 = vpop.f32.mrf.mxu0
    %v52 = vadd.f32 %v24, %v51
    %v53 = vpop.f32.mrf.mxu0
    %54 = vdwg.mxu0
    %v55 = vtanh.pop %v52
    %vm56 = vcmask 254976
    %57 = vst.msk [vmem:[#allocation2] sm:$0x3] %vm56, %v55
    // Predicated region
    $region14: #{_lambda_.7} parent=1 // pred_check
      _
    $region15: #{_lambda_.7} parent=1 // pred_check_branch
      %59 = sbr.rel (0) target = $region17
    $region16: #{_lambda_.7} parent=1 // pred_region
      %61 = vsyncadd [#allocation3], 0
      %s63 = sshll.u32 [#allocation2], 4
      %s64 = int_to_ptr.vmem [resolvable:$true] %s63
      %s65 = sshll.u32 %s3, 4
      %s66 = int_to_ptr.hbm [resolvable:$true] %s65
      %68 = dma.vmem_to_hbm [thread:$0]  %s64, 32, %s66, [#allocation3]
    $region17: #{_lambda_.7} parent=1 // pred_fallthru
      _
    // Predicated region
    $region18: #{_lambda_.7} parent=1 // pred_check
      _
    $region19: #{_lambda_.7} parent=1 // pred_check_branch
      %70 = sbr.rel (0) target = $region21
    $region20: #{_lambda_.7} parent=1 // pred_region
      %72 = dma.done [#allocation3], 32
    $region21: #{_lambda_.7} parent=1 // pred_fallthru
      _
    %73 = vsyncpa [#allocation3], 1

// kernel: _lambda_.4
$region0: #{_lambda_.4}
  #allocation0 [shape = 'u32[]', space=smem, size = 0x4, offset = 0x4, fixed_abs, tag = 'smem constant byte address 0x4 - core index']
  #allocation1 [shape = 'u32[72,128]{1,0:T(1,128)}', space=vmem, size = 0x9000, scoped, tag = 'internal scratch']
  %s0 = inlined_call_operand.vmem [shape: f32[16,32], index: 0, kind: input, shape index: {}]
  %s1 = inlined_call_operand.vmem [shape: f32[1,32], index: 1, kind: input, shape index: {}]
  %s2 = inlined_call_operand.vmem [shape: f32[1,32], index: 2, kind: input, shape index: {}]
  %s3 = inlined_call_operand.vmem [shape: f32[16,32], index: 3, kind: output, shape index: {}]
  %s4 = sld [smem:[#allocation0]]
  $region22: #{_lambda_.4} parent=0
    _
  %s6 = ssub.s32 1, %s4
  %s7 = scalar_select 0, %s6, %s4
  // Predicated region
  $region2: #{_lambda_.4} parent=0 // pred_check
    _
  $region3: #{_lambda_.4} parent=0 // pred_check_branch
    %9 = sbr.rel (0) target = $region5
  $region4: #{_lambda_.4} parent=0 // pred_region
    _
  $region5: #{_lambda_.4} parent=0 // pred_fallthru
    _
  // Predicated region
  $region6: #{_lambda_.4} parent=0 // pred_check
    _
  $region7: #{_lambda_.4} parent=0 // pred_check_branch
    %11 = sbr.rel (0) target = $region9
  $region8: #{_lambda_.4} parent=0 // pred_region
    _
  $region9: #{_lambda_.4} parent=0 // pred_fallthru
    _
  // Predicated region
  $region10: #{_lambda_.4} parent=0 // pred_check
    _
  $region11: #{_lambda_.4} parent=0 // pred_check_branch
    %13 = sbr.rel (0) target = $region13
  $region12: #{_lambda_.4} parent=0 // pred_region
    _
  $region13: #{_lambda_.4} parent=0 // pred_fallthru
    _
  %v14 = vld [vmem:[%s0] sm:$0xff]
  %v15 = vld [vmem:[%s0 + $0x8] sm:$0xff]
  %v16 = vld [vmem:[%s1] sm:$0x1]
  %v17 = vld [vmem:[%s2] sm:$0x1]
  %vm18 = vcmask 261120
  %v19 = vsel %vm18, %v14, 0.0
  %20 = vadd.xlane.f32.xlu0 %v19
  %v21 = vpop.xlane.xlu0 %20
  %v22 = vsel %vm18, %v15, 0.0
  %23 = vadd.xlane.f32.xlu0 %v22
  %v24 = vpop.xlane.xlu0 %23
  %v25 = vrcp.pop 32.0
  %v26 = vmul.f32 32.0, %v25
  %v27 = vsub.f32 1.0, %v26
  %v28 = vmul.f32 %v25, %v27
  %v29 = vadd.f32 %v25, %v28
  %vm30 = vweird.f32 %v25
  %v31 = vsel %vm30, %v25, %v29
  %v32 = vmul.f32 %v21, %v31
  %v33 = vmul.f32 %v24, %v31
  %v34 = vsub.f32 %v14, %v32
  %v35 = vsub.f32 %v15, %v33
  %v36 = vmul.f32 %v34, %v34
  %v37 = vmul.f32 %v35, %v35
  %v38 = vsel %vm18, %v36, 0.0
  %39 = vadd.xlane.f32.xlu0 %v38
  %v40 = vpop.xlane.xlu0 %39
  %v41 = vsel %vm18, %v37, 0.0
  %42 = vadd.xlane.f32.xlu0 %v41
  %v43 = vpop.xlane.xlu0 %42
  %v44 = vmul.f32 %v40, %v31
  %v45 = vmul.f32 %v43, %v31
  %v46 = vadd.f32 %v44, 1e-12
  %v47 = vadd.f32 %v45, 1e-12
  %v48 = vrsqrt.pop %v46
  %v49 = vmul.f32 %v48, %v46
  %v50 = vmul.f32 %v49, %v48
  %v51 = vmul.f32 0.5, %v50
  %v52 = vsub.f32 1.5, %v51
  %v53 = vmul.f32 %v48, %v52
  %vm54 = vweird.f32 %v46
  %vm55 = vweird.f32 %v48
  %vm56 = vmor %vm54, %vm55
  %v57 = vsel %vm56, %v48, %v53
  %v58 = vrsqrt.pop %v47
  %v59 = vmul.f32 %v58, %v47
  %v60 = vmul.f32 %v59, %v58
  %v61 = vmul.f32 0.5, %v60
  %v62 = vsub.f32 1.5, %v61
  %v63 = vmul.f32 %v58, %v62
  %vm64 = vweird.f32 %v47
  %vm65 = vweird.f32 %v58
  %vm66 = vmor %vm64, %vm65
  %v67 = vsel %vm66, %v58, %v63
  %v68 = vmul.f32 %v34, %v57
  %v69 = vmul.f32 %v35, %v67
  %v71 = vperm.slane %v16, 0
  %v73 = vmul.f32 %v68, %v71
  %v74 = vmul.f32 %v69, %v71
  %v76 = vperm.slane %v17, 0
  %v78 = vadd.f32 %v73, %v76
  %v79 = vadd.f32 %v74, %v76
  %80 = vst.msk [vmem:[%s3] sm:$0xff] %vm18, %v78
  %81 = vst.msk [vmem:[%s3 + $0x8] sm:$0xff] %vm18, %v79
  // Predicated region
  $region14: #{_lambda_.4} parent=0 // pred_check
    _
  $region15: #{_lambda_.4} parent=0 // pred_check_branch
    %83 = sbr.rel (0) target = $region17
  $region16: #{_lambda_.4} parent=0 // pred_region
    _
  $region17: #{_lambda_.4} parent=0 // pred_fallthru
    _
  // Predicated region
  $region18: #{_lambda_.4} parent=0 // pred_check
    _
  $region19: #{_lambda_.4} parent=0 // pred_check_branch
    %85 = sbr.rel (0) target = $region21
  $region20: #{_lambda_.4} parent=0 // pred_region
    _
  $region21: #{_lambda_.4} parent=0 // pred_fallthru
    _

// kernel: _lambda_.5
$region0: #{_lambda_.5}
  #allocation0 [shape = 'u32[]', space=smem, size = 0x4, offset = 0x4, fixed_abs, tag = 'smem constant byte address 0x4 - core index']
  #allocation1 [shape = 'u32[72,128]{1,0:T(1,128)}', space=vmem, size = 0x9000, scoped, tag = 'internal scratch']
  %s0 = inlined_call_operand.vmem [shape: f32[16,32], index: 0, kind: input, shape index: {}]
  %s1 = inlined_call_operand.vmem [shape: f32[2,1,8], index: 1, kind: input, shape index: {}]
  %s2 = inlined_call_operand.vmem [shape: bf16[32,96], index: 2, kind: input, shape index: {}]
  %s3 = inlined_call_operand.vmem [shape: f32[1,96], index: 3, kind: input, shape index: {}]
  %s4 = inlined_call_operand.vmem [shape: bf16[32,32], index: 4, kind: input, shape index: {}]
  %s5 = inlined_call_operand.vmem [shape: f32[6,32], index: 5, kind: input, shape index: {}]
  %s6 = inlined_call_operand.vmem [shape: f32[1,64], index: 6, kind: input, shape index: {}]
  %s7 = inlined_call_operand.vmem [shape: bf16[32,64], index: 7, kind: input, shape index: {}]
  %s8 = inlined_call_operand.vmem [shape: bf16[64,32], index: 8, kind: input, shape index: {}]
  %s9 = inlined_call_operand.vmem [shape: f32[16,32], index: 9, kind: output, shape index: {}]
  %s10 = sld [smem:[#allocation0]]
  $region69: #{_lambda_.5} parent=0
    _
  %s12 = ssub.s32 1, %s10
  %s13 = scalar_select 0, %s12, %s10
  loop: start=0, step=1, limit=4
  $region2: #{_lambda_.5} parent=0 // loop_pre_header
    _
  $region3: #{_lambda_.5} parent=0 // loop_header
    %s15 = sphi 0, %s19
    %p16 = scmp.ge.s32.totalorder %s15, 4
    %s25 = sphi 0, %s27
    %s28 = sphi 0, %s25
    %s29 = sphi 0, %s28
    %s45 = sphi 0, %s29
    %s51 = sphi 0, %s53
    %s54 = sphi 0, %s51
    %s55 = sphi 0, %s54
    %s71 = sphi 0, %s55
    %s75 = sphi 0, %s75
    %s77 = sphi 0, %s75
    %s78 = sphi 0, %s77
    %s92 = sphi 0, %s78
    %s96 = sphi 0, %s96
    %s98 = sphi 0, %s96
    %s99 = sphi 0, %s98
    %s113 = sphi 0, %s99
    %s117 = sphi 0, %s117
    %s119 = sphi 0, %s117
    %s120 = sphi 0, %s119
    %s134 = sphi 0, %s120
    %s138 = sphi 0, %s138
    %s140 = sphi 0, %s138
    %s141 = sphi 0, %s140
    %s155 = sphi 0, %s141
    %s159 = sphi 0, %s159
    %s161 = sphi 0, %s159
    %s162 = sphi 0, %s161
    %s176 = sphi 0, %s162
    %s180 = sphi 0, %s180
    %s182 = sphi 0, %s180
    %s183 = sphi 0, %s182
    %s197 = sphi 0, %s183
    %s201 = sphi 0, %s201
    %s203 = sphi 0, %s201
    %s204 = sphi 0, %s203
    %s218 = sphi 0, %s204
    %s224 = sphi 0, %s226
    %s227 = sphi 0, %s224
    %s228 = sphi 0, %s227
    %s244 = sphi 0, %s228
  $region4: #{_lambda_.5} parent=0 // loop_header_branch
    %18 = sbr.rel (%p16) target = $region8
  $region5: #{_lambda_.5} parent=0 // loop_body
    %s20 = ssub.s32 %s15, 1
    %s21 = ssub.s32 %s15, 2
    %s22 = sadd.s32 %s15, 1
    %s23 = ssub.s32 %s15, %s22
    %p24 = scmp.eq.s32.totalorder %s23, 0
    %s26 = sadd.s32 %s25, 1
    %s27 = scalar_select %p24, %s25, %s26
    %p30 = pneg %p24
    %p31 = scmp.eq.s32.totalorder %s15, 1
    %p32 = por %p30, %p31
    %p33 = scmp.ne.s32.totalorder %s25, %s28
    %p34 = scmp.eq.s32.totalorder %s15, 0
    %p35 = por %p33, %p34
    %p36 = scmp.ne.s32.totalorder %s25, %s28
    %p37 = scmp.eq.s32.totalorder %s20, 1
    %p38 = por %p36, %p37
    %p39 = scmp.ne.s32.totalorder %s28, %s29
    %p40 = scmp.eq.s32.totalorder %s20, 0
    %p41 = por %p39, %p40
    %p42 = scmp.ne.s32.totalorder %s28, %s29
    %p43 = scmp.eq.s32.totalorder %s21, 1
    %p44 = por %p42, %p43
    %p46 = scmp.ne.s32.totalorder %s29, %s45
    %p47 = scmp.eq.s32.totalorder %s21, 0
    %p48 = por %p46, %p47
    %s49 = ssub.s32 %s15, %s22
    %p50 = scmp.eq.s32.totalorder %s49, 0
    %s52 = sadd.s32 %s51, 1
    %s53 = scalar_select %p50, %s51, %s52
    %p56 = pneg %p50
    %p57 = scmp.eq.s32.totalorder %s15, 1
    %p58 = por %p56, %p57
    %p59 = scmp.ne.s32.totalorder %s51, %s54
    %p60 = scmp.eq.s32.totalorder %s15, 0
    %p61 = por %p59, %p60
    %p62 = scmp.ne.s32.totalorder %s51, %s54
    %p63 = scmp.eq.s32.totalorder %s20, 1
    %p64 = por %p62, %p63
    %p65 = scmp.ne.s32.totalorder %s54, %s55
    %p66 = scmp.eq.s32.totalorder %s20, 0
    %p67 = por %p65, %p66
    %p68 = scmp.ne.s32.totalorder %s54, %s55
    %p69 = scmp.eq.s32.totalorder %s21, 1
    %p70 = por %p68, %p69
    %p72 = scmp.ne.s32.totalorder %s55, %s71
    %p73 = scmp.eq.s32.totalorder %s21, 0
    %p74 = por %p72, %p73
    %s76 = sadd.s32 %s75, 1
    %p79 = scmp.eq.s32.totalorder %s15, 1
    %p80 = scmp.ne.s32.totalorder %s75, %s77
    %p81 = scmp.eq.s32.totalorder %s15, 0
    %p82 = por %p80, %p81
    %p83 = scmp.ne.s32.totalorder %s75, %s77
    %p84 = scmp.eq.s32.totalorder %s20, 1
    %p85 = por %p83, %p84
    %p86 = scmp.ne.s32.totalorder %s77, %s78
    %p87 = scmp.eq.s32.totalorder %s20, 0
    %p88 = por %p86, %p87
    %p89 = scmp.ne.s32.totalorder %s77, %s78
    %p90 = scmp.eq.s32.totalorder %s21, 1
    %p91 = por %p89, %p90
    %p93 = scmp.ne.s32.totalorder %s78, %s92
    %p94 = scmp.eq.s32.totalorder %s21, 0
    %p95 = por %p93, %p94
    %s97 = sadd.s32 %s96, 1
    %p100 = scmp.eq.s32.totalorder %s15, 1
    %p101 = scmp.ne.s32.totalorder %s96, %s98
    %p102 = scmp.eq.s32.totalorder %s15, 0
    %p103 = por %p101, %p102
    %p104 = scmp.ne.s32.totalorder %s96, %s98
    %p105 = scmp.eq.s32.totalorder %s20, 1
    %p106 = por %p104, %p105
    %p107 = scmp.ne.s32.totalorder %s98, %s99
    %p108 = scmp.eq.s32.totalorder %s20, 0
    %p109 = por %p107, %p108
    %p110 = scmp.ne.s32.totalorder %s98, %s99
    %p111 = scmp.eq.s32.totalorder %s21, 1
    %p112 = por %p110, %p111
    %p114 = scmp.ne.s32.totalorder %s99, %s113
    %p115 = scmp.eq.s32.totalorder %s21, 0
    %p116 = por %p114, %p115
    %s118 = sadd.s32 %s117, 1
    %p121 = scmp.eq.s32.totalorder %s15, 1
    %p122 = scmp.ne.s32.totalorder %s117, %s119
    %p123 = scmp.eq.s32.totalorder %s15, 0
    %p124 = por %p122, %p123
    %p125 = scmp.ne.s32.totalorder %s117, %s119
    %p126 = scmp.eq.s32.totalorder %s20, 1
    %p127 = por %p125, %p126
    %p128 = scmp.ne.s32.totalorder %s119, %s120
    %p129 = scmp.eq.s32.totalorder %s20, 0
    %p130 = por %p128, %p129
    %p131 = scmp.ne.s32.totalorder %s119, %s120
    %p132 = scmp.eq.s32.totalorder %s21, 1
    %p133 = por %p131, %p132
    %p135 = scmp.ne.s32.totalorder %s120, %s134
    %p136 = scmp.eq.s32.totalorder %s21, 0
    %p137 = por %p135, %p136
    %s139 = sadd.s32 %s138, 1
    %p142 = scmp.eq.s32.totalorder %s15, 1
    %p143 = scmp.ne.s32.totalorder %s138, %s140
    %p144 = scmp.eq.s32.totalorder %s15, 0
    %p145 = por %p143, %p144
    %p146 = scmp.ne.s32.totalorder %s138, %s140
    %p147 = scmp.eq.s32.totalorder %s20, 1
    %p148 = por %p146, %p147
    %p149 = scmp.ne.s32.totalorder %s140, %s141
    %p150 = scmp.eq.s32.totalorder %s20, 0
    %p151 = por %p149, %p150
    %p152 = scmp.ne.s32.totalorder %s140, %s141
    %p153 = scmp.eq.s32.totalorder %s21, 1
    %p154 = por %p152, %p153
    %p156 = scmp.ne.s32.totalorder %s141, %s155
    %p157 = scmp.eq.s32.totalorder %s21, 0
    %p158 = por %p156, %p157
    %s160 = sadd.s32 %s159, 1
    %p163 = scmp.eq.s32.totalorder %s15, 1
    %p164 = scmp.ne.s32.totalorder %s159, %s161
    %p165 = scmp.eq.s32.totalorder %s15, 0
    %p166 = por %p164, %p165
    %p167 = scmp.ne.s32.totalorder %s159, %s161
    %p168 = scmp.eq.s32.totalorder %s20, 1
    %p169 = por %p167, %p168
    %p170 = scmp.ne.s32.totalorder %s161, %s162
    %p171 = scmp.eq.s32.totalorder %s20, 0
    %p172 = por %p170, %p171
    %p173 = scmp.ne.s32.totalorder %s161, %s162
    %p174 = scmp.eq.s32.totalorder %s21, 1
    %p175 = por %p173, %p174
    %p177 = scmp.ne.s32.totalorder %s162, %s176
    %p178 = scmp.eq.s32.totalorder %s21, 0
    %p179 = por %p177, %p178
    %s181 = sadd.s32 %s180, 1
    %p184 = scmp.eq.s32.totalorder %s15, 1
    %p185 = scmp.ne.s32.totalorder %s180, %s182
    %p186 = scmp.eq.s32.totalorder %s15, 0
    %p187 = por %p185, %p186
    %p188 = scmp.ne.s32.totalorder %s180, %s182
    %p189 = scmp.eq.s32.totalorder %s20, 1
    %p190 = por %p188, %p189
    %p191 = scmp.ne.s32.totalorder %s182, %s183
    %p192 = scmp.eq.s32.totalorder %s20, 0
    %p193 = por %p191, %p192
    %p194 = scmp.ne.s32.totalorder %s182, %s183
    %p195 = scmp.eq.s32.totalorder %s21, 1
    %p196 = por %p194, %p195
    %p198 = scmp.ne.s32.totalorder %s183, %s197
    %p199 = scmp.eq.s32.totalorder %s21, 0
    %p200 = por %p198, %p199
    %s202 = sadd.s32 %s201, 1
    %p205 = scmp.eq.s32.totalorder %s15, 1
    %p206 = scmp.ne.s32.totalorder %s201, %s203
    %p207 = scmp.eq.s32.totalorder %s15, 0
    %p208 = por %p206, %p207
    %p209 = scmp.ne.s32.totalorder %s201, %s203
    %p210 = scmp.eq.s32.totalorder %s20, 1
    %p211 = por %p209, %p210
    %p212 = scmp.ne.s32.totalorder %s203, %s204
    %p213 = scmp.eq.s32.totalorder %s20, 0
    %p214 = por %p212, %p213
    %p215 = scmp.ne.s32.totalorder %s203, %s204
    %p216 = scmp.eq.s32.totalorder %s21, 1
    %p217 = por %p215, %p216
    %p219 = scmp.ne.s32.totalorder %s204, %s218
    %p220 = scmp.eq.s32.totalorder %s21, 0
    %p221 = por %p219, %p220
    %s222 = ssub.s32 %s15, %s22
    %p223 = scmp.eq.s32.totalorder %s222, 0
    %s225 = sadd.s32 %s224, 1
    %s226 = scalar_select %p223, %s224, %s225
    %p229 = pneg %p223
    %p230 = scmp.eq.s32.totalorder %s15, 1
    %p231 = por %p229, %p230
    %p232 = scmp.ne.s32.totalorder %s224, %s227
    %p233 = scmp.eq.s32.totalorder %s15, 0
    %p234 = por %p232, %p233
    %p235 = scmp.ne.s32.totalorder %s224, %s227
    %p236 = scmp.eq.s32.totalorder %s20, 1
    %p237 = por %p235, %p236
    %p238 = scmp.ne.s32.totalorder %s227, %s228
    %p239 = scmp.eq.s32.totalorder %s20, 0
    %p240 = por %p238, %p239
    %p241 = scmp.ne.s32.totalorder %s227, %s228
    %p242 = scmp.eq.s32.totalorder %s21, 1
    %p243 = por %p241, %p242
    %p245 = scmp.ne.s32.totalorder %s228, %s244
    %p246 = scmp.eq.s32.totalorder %s21, 0
    %p247 = por %p245, %p246
    %p248 = scmp.le.s32.totalorder 1, %s15
    %p249 = scmp.lt.s32.totalorder %s15, 3
    %p250 = pnand %p248, %p249
    %p251 = pneg %p250
    // Predicated region
    $region9: #{_lambda_.5} parent=5 // pred_check
      _
    $region10: #{_lambda_.5} parent=5 // pred_check_branch
      %253 = sbr.rel (%p250) target = $region12
    $region11: #{_lambda_.5} parent=5 // pred_region
      %s254 = ssub.s32 %s15, 1
      // Predicated region
      $region13: #{_lambda_.5} parent=11 // pred_check
        %p255 = pneg %p88
      $region14: #{_lambda_.5} parent=11 // pred_check_branch
        %257 = sbr.rel (%p255) target = $region16
      $region15: #{_lambda_.5} parent=11 // pred_region
        _
      $region16: #{_lambda_.5} parent=11 // pred_fallthru
        _
      // Predicated region
      $region17: #{_lambda_.5} parent=11 // pred_check
        %p258 = pneg %p109
      $region18: #{_lambda_.5} parent=11 // pred_check_branch
        %260 = sbr.rel (%p258) target = $region20
      $region19: #{_lambda_.5} parent=11 // pred_region
        _
      $region20: #{_lambda_.5} parent=11 // pred_fallthru
        _
      // Predicated region
      $region21: #{_lambda_.5} parent=11 // pred_check
        %p261 = pneg %p130
      $region22: #{_lambda_.5} parent=11 // pred_check_branch
        %263 = sbr.rel (%p261) target = $region24
      $region23: #{_lambda_.5} parent=11 // pred_region
        _
      $region24: #{_lambda_.5} parent=11 // pred_fallthru
        _
      // Predicated region
      $region25: #{_lambda_.5} parent=11 // pred_check
        %p264 = pneg %p151
      $region26: #{_lambda_.5} parent=11 // pred_check_branch
        %266 = sbr.rel (%p264) target = $region28
      $region27: #{_lambda_.5} parent=11 // pred_region
        _
      $region28: #{_lambda_.5} parent=11 // pred_fallthru
        _
      // Predicated region
      $region29: #{_lambda_.5} parent=11 // pred_check
        %p267 = pneg %p172
      $region30: #{_lambda_.5} parent=11 // pred_check_branch
        %269 = sbr.rel (%p267) target = $region32
      $region31: #{_lambda_.5} parent=11 // pred_region
        _
      $region32: #{_lambda_.5} parent=11 // pred_fallthru
        _
      // Predicated region
      $region33: #{_lambda_.5} parent=11 // pred_check
        %p270 = pneg %p193
      $region34: #{_lambda_.5} parent=11 // pred_check_branch
        %272 = sbr.rel (%p270) target = $region36
      $region35: #{_lambda_.5} parent=11 // pred_region
        _
      $region36: #{_lambda_.5} parent=11 // pred_fallthru
        _
      // Predicated region
      $region37: #{_lambda_.5} parent=11 // pred_check
        %p273 = pneg %p214
      $region38: #{_lambda_.5} parent=11 // pred_check_branch
        %275 = sbr.rel (%p273) target = $region40
      $region39: #{_lambda_.5} parent=11 // pred_region
        _
      $region40: #{_lambda_.5} parent=11 // pred_fallthru
        _
    $region12: #{_lambda_.5} parent=5 // pred_fallthru
      _
    %p276 = scmp.lt.s32.totalorder %s15, 2
    // Predicated region
    $region41: #{_lambda_.5} parent=5 // pred_check
      %p277 = pneg %p276
    $region42: #{_lambda_.5} parent=5 // pred_check_branch
      %279 = sbr.rel (%p277) target = $region44
    $region43: #{_lambda_.5} parent=5 // pred_region
      // Predicated region
      $region45: #{_lambda_.5} parent=43 // pred_check
        %p280 = pneg %p35
      $region46: #{_lambda_.5} parent=43 // pred_check_branch
        %282 = sbr.rel (%p280) target = $region48
      $region47: #{_lambda_.5} parent=43 // pred_region
        %p283 = scmp.lt.s32.totalorder %s15, 1
        %s284 = scalar_select %p283, %s15, 1
        %s285 = smul.addr %s284, 8
        %s286 = scalar_lea.vmem %s0, %s285
      $region48: #{_lambda_.5} parent=43 // pred_fallthru
        _
      // Predicated region
      $region49: #{_lambda_.5} parent=43 // pred_check
        %p287 = pneg %p61
      $region50: #{_lambda_.5} parent=43 // pred_check_branch
        %289 = sbr.rel (%p287) target = $region52
      $region51: #{_lambda_.5} parent=43 // pred_region
        %p290 = scmp.lt.s32.totalorder %s15, 1
        %s291 = scalar_select %p290, %s15, 1
        %s292 = scalar_lea.vmem %s1, %s291
      $region52: #{_lambda_.5} parent=43 // pred_fallthru
        _
    $region44: #{_lambda_.5} parent=5 // pred_fallthru
      _
    %p293 = scmp.le.s32.totalorder 1, %s15
    %p294 = scmp.lt.s32.totalorder %s15, 3
    %p295 = pnand %p293, %p294
    %p296 = pneg %p295
    // Predicated region
    $region53: #{_lambda_.5} parent=5 // pred_check
      _
    $region54: #{_lambda_.5} parent=5 // pred_check_branch
      %298 = sbr.rel (%p295) target = $region56
    $region55: #{_lambda_.5} parent=5 // pred_region
      %s299 = ssub.s32 %s15, 1
      %p300 = scmp.lt.s32.totalorder %s20, 1
      %s301 = scalar_select %p300, %s20, 1
      %s302 = smul.addr %s301, 8
      %s303 = scalar_lea.vmem %s0, %s302
      %p304 = pneg %p41
      %p305 = pneg %p38
      %p306 = scmp.lt.s32.totalorder %s20, 1
      %s307 = scalar_select %p306, %s20, 1
      %s308 = scalar_lea.vmem %s1, %s307
      %p309 = pneg %p67
      %p310 = pneg %p64
      %p311 = pneg %p88
      %p312 = pneg %p85
      %p313 = pneg %p109
      %p314 = pneg %p106
      %p315 = pneg %p130
      %p316 = pneg %p127
      %p317 = pneg %p151
      %p318 = pneg %p148
      %p319 = pneg %p172
      %p320 = pneg %p169
      %p321 = pneg %p193
      %p322 = pneg %p190
      %p323 = pneg %p214
      %p324 = pneg %p211
      %p325 = pneg %p240
      %p326 = pneg %p237
      %p327 = scmp.lt.s32.totalorder %s20, 1
      %s328 = scalar_select %p327, %s20, 1
      %s329 = smul.addr %s328, 8
      %s330 = scalar_lea.vmem %s9, %s329
      %p331 = scmp.lt.s32.totalorder %s20, 1
      %s332 = scalar_select %p331, %s20, 1
      %s333 = smul.addr %s332, 8
      %s334 = scalar_lea.vmem %s0, %s333
      %p335 = scmp.lt.s32.totalorder %s20, 1
      %s336 = scalar_select %p335, %s20, 1
      %s337 = scalar_lea.vmem %s1, %s336
      %p338 = scmp.lt.s32.totalorder %s20, 1
      %s339 = scalar_select %p338, %s20, 1
      %s340 = smul.addr %s339, 8
      %s341 = scalar_lea.vmem %s9, %s340
      %v343 = vld [vmem:[%s334] sm:$0xff]
      %v344 = vpack.c.bf16 %v343, %v343
      %v345 = vld [vmem:[%s337] sm:$0x1]
      %v346 = vld [vmem:[%s5] sm:$0x3f]
      %v347 = vld [vmem:[%s2] sm:$0xf]
      %v348 = vld [vmem:[%s2 + $0x4] sm:$0xf]
      %v349 = vld [vmem:[%s2 + $0x8] sm:$0xf]
      %v350 = vld [vmem:[%s2 + $0xc] sm:$0xf]
      %v351 = vld [vmem:[%s3] sm:$0x1]
      %v353 = vperm.slane %v351, 0
      %v359 = vunpack.c.l.b16 %v347
      %v360 = vunpack.c.l.b16 %v348
      %v361 = vunpack.c.l.b16 %v349
      %v362 = vunpack.c.l.b16 %v350
      %v363 = vpack.c.b16 %v360, %v359
      %v364 = vpack.c.b16 %v362, %v361
      %vm367 = vcmask 261120
      %v369 = vsel %vm367, %v344, 0
      %371 = vmatpush.bf16.msra.mxu0 0
      %372 = vmatpush.bf16.msra.mxu0 0
      %373 = vmatpush.bf16.msra.mxu0 0
      %374 = vmatpush.bf16.msra.mxu0 0
      %375 = vmatpush.bf16.msra.mxu0 0
      %376 = vmatpush.bf16.msra.mxu0 0
      %377 = vmatpush.bf16.msra.mxu0 %v364
      %378 = vmatpush.bf16.msra.mxu0 %v363
      %379 = vmatmul.bf16.gmra.mxu0 %v369
      %v380 = vpop.f32.mrf.mxu0
      %v381 = vadd.f32 %v353, %v380
      %v382 = vpop.f32.mrf.mxu0
      %383 = vdwg.mxu0
      %v385 = vperm.slane %v345, 0
      %388 = vrot.lane.b32.xlu0 %v381, 96
      %v389 = vpop.permute.xlu0 %388
      %vm390 = vcmask 64512
      %v391 = vsel %vm390, %v381, 0
      %v393 = vsel %vm390, %v389, 0
      %395 = vmatpush.xpose.msra.mxu0 0.0
      %396 = vmatpush.xpose.msra.mxu0 0.0
      %397 = vmatpush.xpose.msra.mxu0 0.0
      %398 = vmatpush.xpose.msra.mxu0 0.0
      %399 = vmatpush.xpose.msra.mxu0 0.0
      %400 = vmatpush.xpose.msra.mxu0 0.0
      %401 = vmatpush.xpose.msra.mxu0 0.0
      %402 = vmatpush.xpose.msra.mxu0 0.0
      %403 = vmatpush.xpose.msra.mxu0 0.0
      %404 = vmatpush.xpose.msra.mxu0 0.0
      %405 = vmatpush.xpose.msra.mxu0 0.0
      %406 = vmatpush.xpose.msra.mxu0 0.0
      %407 = vmatpush.xpose.msra.mxu0 0.0
      %408 = vmatpush.xpose.msra.mxu0 0.0
      %409 = vmatpush.xpose.msra.mxu0 0.0
      %410 = vmatpush.xpose.msra.mxu0 %v393
      %411 = vmatmul.f32.gmra.mxu0 %v391
      %v412 = vpop.f32.mrf.mxu0
      %v413 = vadd.f32 %v385, %v412
      %414 = vdwg.mxu0
      %v415 = vsel %vm390, %v413, -inf
      %416 = vmax.xlane.f32.xlu0 %v415
      %v417 = vpop.xlane.xlu0 %416
      %v418 = vsub.f32 %v413, %v417
      %v419 = vmul.f32 %v418, 1.442695
      %v420 = vpow.pop %v419
      %v421 = vsel %vm390, %v420, 0.0
      %422 = vadd.xlane.f32.xlu0 %v421
      %v423 = vpop.xlane.xlu0 %422
      %v424 = vrcp.pop %v423
      %v425 = vmul.f32 %v420, %v424
      %426 = vrot.lane.b32.xlu0 %v381, 64
      %v427 = vpop.permute.xlu0 %426
      %v430 = vsel %vm390, %v425, 0
      %432 = vmatpush.msra.mxu0 0.0
      %433 = vmatpush.msra.mxu0 0.0
      %434 = vmatpush.msra.mxu0 0.0
      %435 = vmatpush.msra.mxu0 0.0
      %436 = vmatpush.msra.mxu0 0.0
      %437 = vmatpush.msra.mxu0 0.0
      %438 = vmatpush.msra.mxu0 0.0
      %439 = vmatpush.msra.mxu0 0.0
      %440 = vmatpush.msra.mxu0 0.0
      %441 = vmatpush.msra.mxu0 0.0
      %442 = vmatpush.msra.mxu0 0.0
      %443 = vmatpush.msra.mxu0 0.0
      %444 = vmatpush.msra.mxu0 0.0
      %445 = vmatpush.msra.mxu0 0.0
      %446 = vmatpush.msra.mxu0 0.0
      %447 = vmatpush.msra.mxu0 %v427
      %448 = vmatmul.f32.gmra.mxu0 %v430
      %v449 = vpop.f32.mrf.mxu0
      %v450 = vadd.f32 0.0, %v449
      %451 = vdwg.mxu0
      %452 = vrot.lane.b32.xlu0 %v381, 120
      %v453 = vpop.permute.xlu0 %452
      %454 = vrot.lane.b32.xlu0 %v381, 88
      %v455 = vpop.permute.xlu0 %454
      %v456 = vsel %vm390, %v453, 0
      %v458 = vsel %vm390, %v455, 0
      %460 = vmatpush.xpose.msra.mxu0 0.0
      %461 = vmatpush.xpose.msra.mxu0 0.0
      %462 = vmatpush.xpose.msra.mxu0 0.0
      %463 = vmatpush.xpose.msra.mxu0 0.0
      %464 = vmatpush.xpose.msra.mxu0 0.0
      %465 = vmatpush.xpose.msra.mxu0 0.0
      %466 = vmatpush.xpose.msra.mxu0 0.0
      %467 = vmatpush.xpose.msra.mxu0 0.0
      %468 = vmatpush.xpose.msra.mxu0 0.0
      %469 = vmatpush.xpose.msra.mxu0 0.0
      %470 = vmatpush.xpose.msra.mxu0 0.0
      %471 = vmatpush.xpose.msra.mxu0 0.0
      %472 = vmatpush.xpose.msra.mxu0 0.0
      %473 = vmatpush.xpose.msra.mxu0 0.0
      %474 = vmatpush.xpose.msra.mxu0 0.0
      %475 = vmatpush.xpose.msra.mxu0 %v458
      %476 = vmatmul.f32.gmra.mxu0 %v456
      %v477 = vpop.f32.mrf.mxu0
      %v478 = vadd.f32 %v385, %v477
      %479 = vdwg.mxu0
      %v480 = vsel %vm390, %v478, -inf
      %481 = vmax.xlane.f32.xlu0 %v480
      %v482 = vpop.xlane.xlu0 %481
      %v483 = vsub.f32 %v478, %v482
      %v484 = vmul.f32 %v483, 1.442695
      %v485 = vpow.pop %v484
      %v486 = vsel %vm390, %v485, 0.0
      %487 = vadd.xlane.f32.xlu0 %v486
      %v488 = vpop.xlane.xlu0 %487
      %v489 = vrcp.pop %v488
      %v490 = vmul.f32 %v485, %v489
      %491 = vrot.lane.b32.xlu0 %v381, 56
      %v492 = vpop.permute.xlu0 %491
      %v495 = vsel %vm390, %v490, 0
      %497 = vmatpush.msra.mxu0 0.0
      %498 = vmatpush.msra.mxu0 0.0
      %499 = vmatpush.msra.mxu0 0.0
      %500 = vmatpush.msra.mxu0 0.0
      %501 = vmatpush.msra.mxu0 0.0
      %502 = vmatpush.msra.mxu0 0.0
      %503 = vmatpush.msra.mxu0 0.0
      %504 = vmatpush.msra.mxu0 0.0
      %505 = vmatpush.msra.mxu0 0.0
      %506 = vmatpush.msra.mxu0 0.0
      %507 = vmatpush.msra.mxu0 0.0
      %508 = vmatpush.msra.mxu0 0.0
      %509 = vmatpush.msra.mxu0 0.0
      %510 = vmatpush.msra.mxu0 0.0
      %511 = vmatpush.msra.mxu0 0.0
      %512 = vmatpush.msra.mxu0 %v492
      %513 = vmatmul.f32.gmra.mxu0 %v495
      %v514 = vpop.f32.mrf.mxu0
      %v515 = vadd.f32 0.0, %v514
      %516 = vdwg.mxu0
      %517 = vrot.lane.b32.xlu0 %v381, 112
      %v518 = vpop.permute.xlu0 %517
      %519 = vrot.lane.b32.xlu0 %v381, 80
      %v520 = vpop.permute.xlu0 %519
      %v521 = vsel %vm390, %v518, 0
      %v523 = vsel %vm390, %v520, 0
      %525 = vmatpush.xpose.msra.mxu0 0.0
      %526 = vmatpush.xpose.msra.mxu0 0.0
      %527 = vmatpush.xpose.msra.mxu0 0.0
      %528 = vmatpush.xpose.msra.mxu0 0.0
      %529 = vmatpush.xpose.msra.mxu0 0.0
      %530 = vmatpush.xpose.msra.mxu0 0.0
      %531 = vmatpush.xpose.msra.mxu0 0.0
      %532 = vmatpush.xpose.msra.mxu0 0.0
      %533 = vmatpush.xpose.msra.mxu0 0.0
      %534 = vmatpush.xpose.msra.mxu0 0.0
      %535 = vmatpush.xpose.msra.mxu0 0.0
      %536 = vmatpush.xpose.msra.mxu0 0.0
      %537 = vmatpush.xpose.msra.mxu0 0.0
      %538 = vmatpush.xpose.msra.mxu0 0.0
      %539 = vmatpush.xpose.msra.mxu0 0.0
      %540 = vmatpush.xpose.msra.mxu0 %v523
      %541 = vmatmul.f32.gmra.mxu0 %v521
      %v542 = vpop.f32.mrf.mxu0
      %v543 = vadd.f32 %v385, %v542
      %544 = vdwg.mxu0
      %v545 = vsel %vm390, %v543, -inf
      %546 = vmax.xlane.f32.xlu0 %v545
      %v547 = vpop.xlane.xlu0 %546
      %v548 = vsub.f32 %v543, %v547
      %v549 = vmul.f32 %v548, 1.442695
      %v550 = vpow.pop %v549
      %v551 = vsel %vm390, %v550, 0.0
      %552 = vadd.xlane.f32.xlu0 %v551
      %v553 = vpop.xlane.xlu0 %552
      %v554 = vrcp.pop %v553
      %v555 = vmul.f32 %v550, %v554
      %556 = vrot.lane.b32.xlu0 %v381, 48
      %v557 = vpop.permute.xlu0 %556
      %v560 = vsel %vm390, %v555, 0
      %562 = vmatpush.msra.mxu0 0.0
      %563 = vmatpush.msra.mxu0 0.0
      %564 = vmatpush.msra.mxu0 0.0
      %565 = vmatpush.msra.mxu0 0.0
      %566 = vmatpush.msra.mxu0 0.0
      %567 = vmatpush.msra.mxu0 0.0
      %568 = vmatpush.msra.mxu0 0.0
      %569 = vmatpush.msra.mxu0 0.0
      %570 = vmatpush.msra.mxu0 0.0
      %571 = vmatpush.msra.mxu0 0.0
      %572 = vmatpush.msra.mxu0 0.0
      %573 = vmatpush.msra.mxu0 0.0
      %574 = vmatpush.msra.mxu0 0.0
      %575 = vmatpush.msra.mxu0 0.0
      %576 = vmatpush.msra.mxu0 0.0
      %577 = vmatpush.msra.mxu0 %v557
      %578 = vmatmul.f32.gmra.mxu0 %v560
      %v579 = vpop.f32.mrf.mxu0
      %v580 = vadd.f32 0.0, %v579
      %581 = vdwg.mxu0
      %582 = vrot.lane.b32.xlu0 %v381, 104
      %v583 = vpop.permute.xlu0 %582
      %584 = vrot.lane.b32.xlu0 %v381, 72
      %v585 = vpop.permute.xlu0 %584
      %v586 = vsel %vm390, %v583, 0
      %v588 = vsel %vm390, %v585, 0
      %590 = vmatpush.xpose.msra.mxu0 0.0
      %591 = vmatpush.xpose.msra.mxu0 0.0
      %592 = vmatpush.xpose.msra.mxu0 0.0
      %593 = vmatpush.xpose.msra.mxu0 0.0
      %594 = vmatpush.xpose.msra.mxu0 0.0
      %595 = vmatpush.xpose.msra.mxu0 0.0
      %596 = vmatpush.xpose.msra.mxu0 0.0
      %597 = vmatpush.xpose.msra.mxu0 0.0
      %598 = vmatpush.xpose.msra.mxu0 0.0
      %599 = vmatpush.xpose.msra.mxu0 0.0
      %600 = vmatpush.xpose.msra.mxu0 0.0
      %601 = vmatpush.xpose.msra.mxu0 0.0
      %602 = vmatpush.xpose.msra.mxu0 0.0
      %603 = vmatpush.xpose.msra.mxu0 0.0
      %604 = vmatpush.xpose.msra.mxu0 0.0
      %605 = vmatpush.xpose.msra.mxu0 %v588
      %606 = vmatmul.f32.gmra.mxu0 %v586
      %v607 = vpop.f32.mrf.mxu0
      %v608 = vadd.f32 %v385, %v607
      %609 = vdwg.mxu0
      %v610 = vsel %vm390, %v608, -inf
      %611 = vmax.xlane.f32.xlu0 %v610
      %v612 = vpop.xlane.xlu0 %611
      %v613 = vsub.f32 %v608, %v612
      %v614 = vmul.f32 %v613, 1.442695
      %v615 = vpow.pop %v614
      %v616 = vsel %vm390, %v615, 0.0
      %617 = vadd.xlane.f32.xlu0 %v616
      %v618 = vpop.xlane.xlu0 %617
      %v619 = vrcp.pop %v618
      %v620 = vmul.f32 %v615, %v619
      %621 = vrot.lane.b32.xlu0 %v381, 40
      %v622 = vpop.permute.xlu0 %621
      %v625 = vsel %vm390, %v620, 0
      %627 = vmatpush.msra.mxu0 0.0
      %628 = vmatpush.msra.mxu0 0.0
      %629 = vmatpush.msra.mxu0 0.0
      %630 = vmatpush.msra.mxu0 0.0
      %631 = vmatpush.msra.mxu0 0.0
      %632 = vmatpush.msra.mxu0 0.0
      %633 = vmatpush.msra.mxu0 0.0
      %634 = vmatpush.msra.mxu0 0.0
      %635 = vmatpush.msra.mxu0 0.0
      %636 = vmatpush.msra.mxu0 0.0
      %637 = vmatpush.msra.mxu0 0.0
      %638 = vmatpush.msra.mxu0 0.0
      %639 = vmatpush.msra.mxu0 0.0
      %640 = vmatpush.msra.mxu0 0.0
      %641 = vmatpush.msra.mxu0 0.0
      %642 = vmatpush.msra.mxu0 %v622
      %643 = vmatmul.f32.gmra.mxu0 %v625
      %v644 = vpop.f32.mrf.mxu0
      %v645 = vadd.f32 0.0, %v644
      %646 = vdwg.mxu0
      %648 = vrot.lane.b32.xlu0 %v515, 8
      %v649 = vpop.permute.xlu0 %648
      %652 = vrot.lane.b32.xlu0 %v580, 16
      %v653 = vpop.permute.xlu0 %652
      %656 = vrot.lane.b32.xlu0 %v645, 24
      %v657 = vpop.permute.xlu0 %656
      %v659 = vsel %vm390, %v450, %v649
      %vm660 = vcmask 130048
      %v661 = vsel %vm660, %v659, %v653
      %vm662 = vcmask 195584
      %v663 = vsel %vm662, %v661, %v657
      %v664 = vpack.c.bf16 %v663, %v663
      %v665 = vld [vmem:[%s4] sm:$0xf]
      %v666 = vld [vmem:[%s4 + $0x4] sm:$0xf]
      %v667 = vld [vmem:[%s4 + $0x8] sm:$0xf]
      %v668 = vld [vmem:[%s4 + $0xc] sm:$0xf]
      %v669 = vperm.slane %v346, 0
      %v674 = vunpack.c.l.b16 %v665
      %v675 = vunpack.c.l.b16 %v666
      %v676 = vunpack.c.l.b16 %v667
      %v677 = vunpack.c.l.b16 %v668
      %v678 = vpack.c.b16 %v675, %v674
      %v679 = vpack.c.b16 %v677, %v676
      %v683 = vsel %vm367, %v664, 0
      %685 = vmatpush.bf16.msra.mxu0 0
      %686 = vmatpush.bf16.msra.mxu0 0
      %687 = vmatpush.bf16.msra.mxu0 0
      %688 = vmatpush.bf16.msra.mxu0 0
      %689 = vmatpush.bf16.msra.mxu0 0
      %690 = vmatpush.bf16.msra.mxu0 0
      %691 = vmatpush.bf16.msra.mxu0 %v679
      %692 = vmatpush.bf16.msra.mxu0 %v678
      %693 = vmatmul.bf16.gmra.mxu0 %v683
      %v694 = vpop.f32.mrf.mxu0
      %v695 = vadd.f32 %v669, %v694
      %v696 = vpop.f32.mrf.mxu0
      %697 = vdwg.mxu0
      %v698 = vadd.f32 %v695, %v343
      %v699 = vsel %vm367, %v698, 0.0
      %700 = vadd.xlane.f32.xlu0 %v699
      %v701 = vpop.xlane.xlu0 %700
      %v702 = vrcp.pop 32.0
      %v703 = vmul.f32 32.0, %v702
      %v704 = vsub.f32 1.0, %v703
      %v705 = vmul.f32 %v702, %v704
      %v706 = vadd.f32 %v702, %v705
      %vm707 = vweird.f32 %v702
      %v708 = vsel %vm707, %v702, %v706
      %v709 = vmul.f32 %v701, %v708
      %v710 = vsub.f32 %v698, %v709
      %v711 = vmul.f32 %v710, %v710
      %v712 = vsel %vm367, %v711, 0.0
      %713 = vadd.xlane.f32.xlu0 %v712
      %v714 = vpop.xlane.xlu0 %713
      %v715 = vmul.f32 %v714, %v708
      %v716 = vadd.f32 %v715, 1e-12
      %v717 = vrsqrt.pop %v716
      %v718 = vmul.f32 %v717, %v716
      %v719 = vmul.f32 %v718, %v717
      %v720 = vmul.f32 0.5, %v719
      %v721 = vsub.f32 1.5, %v720
      %v722 = vmul.f32 %v717, %v721
      %vm723 = vweird.f32 %v716
      %vm724 = vweird.f32 %v717
      %vm725 = vmor %vm723, %vm724
      %v726 = vsel %vm725, %v717, %v722
      %v727 = vmul.f32 %v710, %v726
      %v728 = vperm.slane %v346, 1
      %v729 = vmul.f32 %v727, %v728
      %v730 = vperm.slane %v346, 2
      %v731 = vadd.f32 %v729, %v730
      %v732 = vpack.c.bf16 %v731, %v731
      %v733 = vld [vmem:[%s7] sm:$0xf]
      %v734 = vld [vmem:[%s7 + $0x4] sm:$0xf]
      %v735 = vld [vmem:[%s7 + $0x8] sm:$0xf]
      %v736 = vld [vmem:[%s7 + $0xc] sm:$0xf]
      %v737 = vld [vmem:[%s6] sm:$0x1]
      %v739 = vperm.slane %v737, 0
      %v745 = vunpack.c.l.b16 %v733
      %v746 = vunpack.c.l.b16 %v734
      %v747 = vunpack.c.l.b16 %v735
      %v748 = vunpack.c.l.b16 %v736
      %v749 = vpack.c.b16 %v746, %v745
      %v750 = vpack.c.b16 %v748, %v747
      %v754 = vsel %vm367, %v732, 0
      %756 = vmatpush.bf16.msra.mxu0 0
      %757 = vmatpush.bf16.msra.mxu0 0
      %758 = vmatpush.bf16.msra.mxu0 0
      %759 = vmatpush.bf16.msra.mxu0 0
      %760 = vmatpush.bf16.msra.mxu0 0
      %761 = vmatpush.bf16.msra.mxu0 0
      %762 = vmatpush.bf16.msra.mxu0 %v750
      %763 = vmatpush.bf16.msra.mxu0 %v749
      %764 = vmatmul.bf16.gmra.mxu0 %v754
      %v765 = vpop.f32.mrf.mxu0
      %v766 = vadd.f32 %v739, %v765
      %v767 = vpop.f32.mrf.mxu0
      %768 = vdwg.mxu0
      %v769 = vmul.f32 %v766, 0.5
      %v770 = vmul.f32 %v766, 0.044715
      %v771 = vmul.f32 %v770, %v766
      %v772 = vmul.f32 %v771, %v766
      %v773 = vadd.f32 %v766, %v772
      %v774 = vmul.f32 %v773, 0.7978846
      %v775 = vtanh.pop %v774
      %v776 = vadd.f32 %v775, 1.0
      %v777 = vmul.f32 %v769, %v776
      %v778 = vpack.c.bf16 %v777, %v777
      %v779 = vld [vmem:[%s8] sm:$0xf]
      %v780 = vld [vmem:[%s8 + $0x4] sm:$0xf]
      %v781 = vld [vmem:[%s8 + $0x8] sm:$0xf]
      %v782 = vld [vmem:[%s8 + $0xc] sm:$0xf]
      %v783 = vld [vmem:[%s8 + $0x10] sm:$0xf]
      %v784 = vld [vmem:[%s8 + $0x14] sm:$0xf]
      %v785 = vld [vmem:[%s8 + $0x18] sm:$0xf]
      %v786 = vld [vmem:[%s8 + $0x1c] sm:$0xf]
      %v787 = vperm.slane %v346, 3
      %v796 = vunpack.c.l.b16 %v779
      %v797 = vunpack.c.l.b16 %v780
      %v798 = vunpack.c.l.b16 %v781
      %v799 = vunpack.c.l.b16 %v782
      %v800 = vunpack.c.l.b16 %v783
      %v801 = vunpack.c.l.b16 %v784
      %v802 = vunpack.c.l.b16 %v785
      %v803 = vunpack.c.l.b16 %v786
      %v804 = vpack.c.b16 %v797, %v796
      %v805 = vpack.c.b16 %v799, %v798
      %v806 = vpack.c.b16 %v801, %v800
      %v807 = vpack.c.b16 %v803, %v802
      %vm812 = vcmask 523264
      %v814 = vsel %vm812, %v778, 0
      %816 = vmatpush.bf16.msra.mxu0 0
      %817 = vmatpush.bf16.msra.mxu0 0
      %818 = vmatpush.bf16.msra.mxu0 0
      %819 = vmatpush.bf16.msra.mxu0 0
      %820 = vmatpush.bf16.msra.mxu0 %v807
      %821 = vmatpush.bf16.msra.mxu0 %v806
      %822 = vmatpush.bf16.msra.mxu0 %v805
      %823 = vmatpush.bf16.msra.mxu0 %v804
      %824 = vmatmul.bf16.gmra.mxu0 %v814
      %v825 = vpop.f32.mrf.mxu0
      %v826 = vadd.f32 %v787, %v825
      %v827 = vpop.f32.mrf.mxu0
      %828 = vdwg.mxu0
      %v829 = vadd.f32 %v826, %v731
      %v830 = vsel %vm367, %v829, 0.0
      %831 = vadd.xlane.f32.xlu0 %v830
      %v832 = vpop.xlane.xlu0 %831
      %v833 = vmul.f32 %v832, %v708
      %v834 = vsub.f32 %v829, %v833
      %v835 = vmul.f32 %v834, %v834
      %v836 = vsel %vm367, %v835, 0.0
      %837 = vadd.xlane.f32.xlu0 %v836
      %v838 = vpop.xlane.xlu0 %837
      %v839 = vmul.f32 %v838, %v708
      %v840 = vadd.f32 %v839, 1e-12
      %v841 = vrsqrt.pop %v840
      %v842 = vmul.f32 %v841, %v840
      %v843 = vmul.f32 %v842, %v841
      %v844 = vmul.f32 0.5, %v843
      %v845 = vsub.f32 1.5, %v844
      %v846 = vmul.f32 %v841, %v845
      %vm847 = vweird.f32 %v840
      %vm848 = vweird.f32 %v841
      %vm849 = vmor %vm847, %vm848
      %v850 = vsel %vm849, %v841, %v846
      %v851 = vmul.f32 %v834, %v850
      %v852 = vperm.slane %v346, 4
      %v853 = vmul.f32 %v851, %v852
      %v854 = vperm.slane %v346, 5
      %v855 = vadd.f32 %v853, %v854
      %856 = vst.msk [vmem:[%s341] sm:$0xff] %vm367, %v855
      %p857 = scmp.lt.s32.totalorder %s20, 1
      %s858 = scalar_select %p857, %s20, 1
      %s859 = smul.addr %s858, 8
      %s860 = scalar_lea.vmem %s9, %s859
      // Predicated region
      $region57: #{_lambda_.5} parent=55 // pred_check
        %p861 = pneg %p237
      $region58: #{_lambda_.5} parent=55 // pred_check_branch
        %863 = sbr.rel (%p861) target = $region60
      $region59: #{_lambda_.5} parent=55 // pred_region
        _
      $region60: #{_lambda_.5} parent=55 // pred_fallthru
        _
    $region56: #{_lambda_.5} parent=5 // pred_fallthru
      _
    %p864 = scmp.le.s32.totalorder 2, %s15
    // Predicated region
    $region61: #{_lambda_.5} parent=5 // pred_check
      %p865 = pneg %p864
    $region62: #{_lambda_.5} parent=5 // pred_check_branch
      %867 = sbr.rel (%p865) target = $region64
    $region63: #{_lambda_.5} parent=5 // pred_region
      %s868 = ssub.s32 %s15, 2
      // Predicated region
      $region65: #{_lambda_.5} parent=63 // pred_check
        %p869 = pneg %p243
      $region66: #{_lambda_.5} parent=63 // pred_check_branch
        %871 = sbr.rel (%p869) target = $region68
      $region67: #{_lambda_.5} parent=63 // pred_region
        %p872 = scmp.lt.s32.totalorder %s21, 1
        %s873 = scalar_select %p872, %s21, 1
        %s874 = smul.addr %s873, 8
        %s875 = scalar_lea.vmem %s9, %s874
      $region68: #{_lambda_.5} parent=63 // pred_fallthru
        _
    $region64: #{_lambda_.5} parent=5 // pred_fallthru
      _
  $region6: #{_lambda_.5} parent=0 // loop_footer
    %s19 = sadd.s32 1, %s15
  $region7: #{_lambda_.5} parent=0 // loop_footer_branch
    %14 = sbr.rel target = $region3
  $region8: #{_lambda_.5} parent=0 // loop_exit
    _

</llo_original>
